<compile_context>
chip_gen: v7x
topology: tpu7x:2x2x1
jax: 0.10.0
libtpu: 0.0.40
codegen_flags: <defaults>
</compile_context>

<pallas_src>
import functools

import jax
import jax.numpy as jnp
from jax import lax
from jax.experimental import pallas as pl
from jax.experimental.pallas import tpu as pltpu


def _interp_matrix(out_size, in_size, dtype=jnp.float32):
    """1-D bilinear interpolation matrix (out_size, in_size), PyTorch
    F.interpolate(mode='bilinear', align_corners=True) semantics."""
    i = jnp.arange(out_size, dtype=jnp.float32)
    scale = (in_size - 1) / (out_size - 1) if out_size > 1 else 0.0
    src = i * scale
    i0 = jnp.clip(jnp.floor(src).astype(jnp.int32), 0, in_size - 1)
    i1 = jnp.clip(i0 + 1, 0, in_size - 1)
    frac = src - i0.astype(jnp.float32)
    m = (jax.nn.one_hot(i0, in_size, dtype=jnp.float32) * (1.0 - frac)[:, None]
         + jax.nn.one_hot(i1, in_size, dtype=jnp.float32) * frac[:, None])
    return m.astype(dtype)


def _ffm_kernel(local_ref, gcat_ref, rh_ref, rwT_ref, wl_ref, bl_ref, bg_ref,
                out_ref, *, cl, cg, t_h, hg, wg_sz, w_sz):
    # local_ref: (1, Cl, t_h, W)        gcat_ref: (1, 2Cg, Hg, Wg) = [g ; wg@g]
    # rh_ref:    (t_h, Hg)              rwT_ref:  (Wg, W)
    # wl_ref:    (Cg, Cl)               bl_ref/bg_ref: (Cg, 1)
    f32 = jnp.float32
    l = local_ref[0].astype(f32)                    # (Cl, t_h, W)
    g = gcat_ref[0].astype(f32)                     # (2Cg, Hg, Wg)
    rh = rh_ref[...].astype(f32)                    # (t_h, Hg)
    rwT = rwT_ref[...].astype(f32)                  # (Wg, W)
    cg2 = 2 * cg

    # ---- separable align_corners=True bilinear resize of the stacked global ----
    # 1) contract Hg: batched MXU matmul  (2Cg, t_h, Hg) x (2Cg, Hg, Wg) -> (2Cg, t_h, Wg)
    rh_b = jnp.broadcast_to(rh[None, :, :], (cg2, t_h, hg))
    tmp = lax.dot_general(rh_b, g, (((2,), (1,)), ((0,), (0,))),
                          preferred_element_type=f32)
    # 2) contract Wg -> W on the lane axis
    if t_h % 8 == 0:
        # leading-dim merge keeps the (sublane, lane) layout intact
        up = jnp.dot(tmp.reshape(cg2 * t_h, wg_sz), rwT,
                     preferred_element_type=f32).reshape(cg2, t_h, w_sz)
    else:
        rw_b = jnp.broadcast_to(rwT[None, :, :], (cg2, wg_sz, w_sz))
        up = lax.dot_general(tmp, rw_b, (((2,), (1,)), ((0,), (0,))),
                             preferred_element_type=f32)

    gup = up[:cg]                                   # bilinear(global)        (Cg, t_h, W)
    gt = up[cg:] + bg_ref[...].astype(f32)[:, :, None]   # global_conv(gup)   (Cg, t_h, W)

    # ---- local 1x1 conv ----
    wl = wl_ref[...].astype(f32)                    # (Cg, Cl)
    bl = bl_ref[...].astype(f32)[:, :, None]        # (Cg, 1, 1)
    if cl < 16:
        # Tiny channel counts: a handful of VPU broadcast MACs beats the MXU
        # (and avoids a spatial-flatten relayout).
        lt = jnp.zeros((cg, t_h, w_sz), f32) + bl
        for k in range(cl):
            lt = lt + wl[:, k:k + 1, None] * l[k:k + 1]
    else:
        # Realistic channel counts: one MXU matmul over the flattened spatial
        # tile (minor-dim reshape is a one-time per-tile relayout).
        lt = jnp.dot(wl, l.reshape(cl, t_h * w_sz),
                     preferred_element_type=f32).reshape(cg, t_h, w_sz) + bl

    fw = 1.0 / (1.0 + jnp.exp(-(lt + gt)))          # sigmoid (exact)
    fused = gup + fw * (l - gup)                    # == l*fw + gup*(1-fw)
    out_ref[0] = fused.astype(out_ref.dtype)


def _vmem_estimate_bytes(t_h, W, Cl, Cg, Hg, Wg):
    """Rough f32 VMEM footprint: double-buffered blocks + in-kernel temporaries."""
    ln = lambda x: max(x, 128)                      # lane padding
    dbl_blocks = 2 * ((Cl + Cg) * t_h * ln(W)       # local in + out
                      + 2 * Cg * Hg * ln(Wg)        # stacked global (resident)
                      + t_h * ln(Hg) + Wg * ln(W)
                      + Cg * ln(Cl) + 2 * Cg * ln(1))
    temps = (2 * Cg * t_h * (ln(Hg) + ln(Wg))       # rh broadcast + tmp
             + 6 * Cg * t_h * ln(W))                # up / lt / gt / fw / fused
    return 4 * (dbl_blocks + temps)


def _pick_row_tile(N, H, W, Cl, Cg, Hg, Wg, budget_bytes=16 * 2 ** 20):
    """Largest row tile (multiple of 8, or full H) that fits the VMEM budget."""
    cands = [t for t in range(H, 0, -1) if H % t == 0 and (t % 8 == 0 or t == H)]
    fit = [t for t in cands if _vmem_estimate_bytes(t, W, Cl, Cg, Hg, Wg) <= budget_bytes]
    if not fit:
        fit = [cands[-1]]                           # smallest legal tile; raise vmem limit
    if N == 1:
        # keep >= 2 grid steps so both v7x TensorCores get work
        two_step = [t for t in fit if H // t >= 2]
        if two_step:
            return two_step[0]
    return fit[0]


def feature_fusion_pallas(local_feature, global_feature, wl, bl, wg, bg):
    """FeatureFusionModule.forward.

    local_feature:  (N, Cl, H, W)      global_feature: (N, Cg, Hg, Wg)
    wl: (Cg, Cl) local_conv weight     bl: (Cg,)
    wg: (Cg, Cg) global_conv weight    bg: (Cg,)
    """
    N, Cl, H, W = local_feature.shape
    Ng, Cg, Hg, Wg = global_feature.shape
    assert N == Ng
    assert wl.shape == (Cg, Cl) and wg.shape == (Cg, Cg)
    # The module's elementwise fusion requires matching channel counts.
    assert Cl == Cg, "FeatureFusionModule needs channels_local == channels_global"

    # Tiny separable align_corners=True resize operators.
    Rh = _interp_matrix(H, Hg)            # (H, Hg)
    RwT = _interp_matrix(W, Wg).T         # (Wg, W)

    # Fuse the global 1x1 conv through the (linear) resize:
    #   wg @ Up(g) + bg == Up(wg @ g) + bg.
    # Stack [g ; wg@g] so one in-kernel upsample produces gup AND gt.
    g2 = jnp.einsum("oc,nchw->nohw", wg, global_feature)
    gcat = jnp.concatenate([global_feature, g2], axis=1)      # (N, 2Cg, Hg, Wg)

    t_h = _pick_row_tile(N, H, W, Cl, Cg, Hg, Wg)
    num_h = H // t_h
    est = _vmem_estimate_bytes(t_h, W, Cl, Cg, Hg, Wg)
    vmem_limit = int(min(48 * 2 ** 20, max(16 * 2 ** 20, 2 * est)))

    flops = int(N * (4 * Cg * H * Wg * (Hg + W)    # stacked separable resize
                     + 2 * Cg * Cl * H * W         # local 1x1 conv
                     + 8 * Cg * H * W))            # gate + blend
    transcendentals = int(N * Cg * H * W)
    bytes_accessed = int(4 * N * ((Cl + Cg) * H * W + 2 * Cg * Hg * Wg)
                         + 4 * (H * Hg + Wg * W + Cg * Cl + 2 * Cg))

    kernel = functools.partial(_ffm_kernel, cl=Cl, cg=Cg, t_h=t_h,
                               hg=Hg, wg_sz=Wg, w_sz=W)

    out = pl.pallas_call(
        kernel,
        out_shape=jax.ShapeDtypeStruct((N, Cg, H, W), local_feature.dtype),
        grid_spec=pltpu.PrefetchScalarGridSpec(
            num_scalar_prefetch=0,
            # Batch OUTER, row tiles INNER: the small stacked-global block
            # stays resident across every row tile of a batch element.
            grid=(N, num_h),
            in_specs=[
                pl.BlockSpec((1, Cl, t_h, W), lambda n, t: (n, 0, t, 0)),       # local
                pl.BlockSpec((1, 2 * Cg, Hg, Wg), lambda n, t: (n, 0, 0, 0)),   # [g; wg@g]
                pl.BlockSpec((t_h, Hg), lambda n, t: (t, 0)),                   # Rh rows
                pl.BlockSpec((Wg, W), lambda n, t: (0, 0)),                     # Rw^T (resident)
                pl.BlockSpec((Cg, Cl), lambda n, t: (0, 0)),                    # wl
                pl.BlockSpec((Cg, 1), lambda n, t: (0, 0)),                     # bl
                pl.BlockSpec((Cg, 1), lambda n, t: (0, 0)),                     # bg
            ],
            out_specs=pl.BlockSpec((1, Cg, t_h, W), lambda n, t: (n, 0, t, 0)),
        ),
        compiler_params=pltpu.CompilerParams(
            dimension_semantics=("parallel", "parallel"),
            vmem_limit_bytes=vmem_limit),
        cost_estimate=pl.CostEstimate(flops=flops,
                                      transcendentals=transcendentals,
                                      bytes_accessed=bytes_accessed),
    )(local_feature, gcat, Rh, RwT, wl, bl.reshape(Cg, 1), bg.reshape(Cg, 1))

    return out


if __name__ == "__main__":
    # Small shapes consistent with the module: batch=2, channels=4,
    # local spatial 16x16, global spatial 8x8 (2x bilinear upsample).
    N, C = 2, 4
    H = W = 16
    Hg = Wg = 8

    key = jax.random.PRNGKey(0)
    k1, k2, k3, k4, k5, k6 = jax.random.split(key, 6)

    local_f = jax.random.normal(k1, (N, C, H, W), dtype=jnp.float32)
    global_f = jax.random.normal(k2, (N, C, Hg, Wg), dtype=jnp.float32)

    # nn.Conv2d(Cin, Cout, 1) init style: uniform(-1/sqrt(fan_in), +1/sqrt(fan_in)).
    bound = 1.0 / (C ** 0.5)
    wl = jax.random.uniform(k3, (C, C), minval=-bound, maxval=bound, dtype=jnp.float32)
    bl = jax.random.uniform(k4, (C,), minval=-bound, maxval=bound, dtype=jnp.float32)
    wg = jax.random.uniform(k5, (C, C), minval=-bound, maxval=bound, dtype=jnp.float32)
    bg = jax.random.uniform(k6, (C,), minval=-bound, maxval=bound, dtype=jnp.float32)

    out = feature_fusion_pallas(local_f, global_f, wl, bl, wg, bg)
    jax.block_until_ready(out)

    # Pure-JAX reference (same align_corners=True interpolation weights).
    Rh = _interp_matrix(H, Hg)
    Rw = _interp_matrix(W, Wg)
    gup = jnp.einsum("ncuv,hu,wv->nchw", global_f, Rh, Rw)
    lt = jnp.einsum("oc,nchw->nohw", wl, local_f) + bl[None, :, None, None]
    gt = jnp.einsum("oc,nchw->nohw", wg, gup) + bg[None, :, None, None]
    fw = jax.nn.sigmoid(lt + gt)
    ref = local_f * fw + gup * (1.0 - fw)

    assert out.shape == (N, C, H, W)
    assert jnp.allclose(out, ref, atol=1e-5, rtol=1e-5), float(jnp.max(jnp.abs(out - ref)))

    print("KERNEL_OK")
</pallas_src>

<mosaic_0001>
module attributes {stable_mosaic.version = 11 : i64} {
  func.func @_ffm_kernel(%arg0: i32, %arg1: i32, %arg2: memref<1x4x16x16xf32, #tpu.memory_space<vmem>>, %arg3: memref<1x8x8x8xf32, #tpu.memory_space<vmem>>, %arg4: memref<16x8xf32, #tpu.memory_space<vmem>>, %arg5: memref<8x16xf32, #tpu.memory_space<vmem>>, %arg6: memref<4x4xf32, #tpu.memory_space<vmem>>, %arg7: memref<4x1xf32, #tpu.memory_space<vmem>>, %arg8: memref<4x1xf32, #tpu.memory_space<vmem>>, %arg9: memref<1x4x16x16xf32, #tpu.memory_space<vmem>>) attributes {dimension_semantics = [#tpu.dimension_semantics<parallel>, #tpu.dimension_semantics<parallel>], iteration_bounds = array<i64: 2, 1>, scalar_prefetch = 0 : i64, scratch_operands = 0 : i64, tpu.core_type = #tpu.core_type<tc>, window_params = [{transform_indices = @transform_0, window_bounds = array<i64: 1, 4, 16, 16>}, {transform_indices = @transform_1, window_bounds = array<i64: 1, 8, 8, 8>}, {transform_indices = @transform_2, window_bounds = array<i64: 16, 8>}, {pipeline_mode = #tpu.pipeline_mode<synchronous>, transform_indices = @transform_3, window_bounds = array<i64: 8, 16>}, {pipeline_mode = #tpu.pipeline_mode<synchronous>, transform_indices = @transform_4, window_bounds = array<i64: 4, 4>}, {pipeline_mode = #tpu.pipeline_mode<synchronous>, transform_indices = @transform_5, window_bounds = array<i64: 4, 1>}, {pipeline_mode = #tpu.pipeline_mode<synchronous>, transform_indices = @transform_6, window_bounds = array<i64: 4, 1>}, {transform_indices = @transform_7, window_bounds = array<i64: 1, 4, 16, 16>}]} {
    %c0 = arith.constant 0 : index
    %c0_0 = arith.constant 0 : index
    %c0_1 = arith.constant 0 : index
    %c0_2 = arith.constant 0 : index
    %0 = vector.load %arg2[%c0, %c0_0, %c0_1, %c0_2] : memref<1x4x16x16xf32, #tpu.memory_space<vmem>>, vector<1x4x16x16xf32>
    %1 = vector.shape_cast %0 : vector<1x4x16x16xf32> to vector<4x16x16xf32>
    %c0_3 = arith.constant 0 : index
    %c0_4 = arith.constant 0 : index
    %c0_5 = arith.constant 0 : index
    %c0_6 = arith.constant 0 : index
    %2 = vector.load %arg3[%c0_3, %c0_4, %c0_5, %c0_6] : memref<1x8x8x8xf32, #tpu.memory_space<vmem>>, vector<1x8x8x8xf32>
    %3 = vector.shape_cast %2 : vector<1x8x8x8xf32> to vector<8x8x8xf32>
    %c0_7 = arith.constant 0 : index
    %c0_8 = arith.constant 0 : index
    %4 = vector.load %arg4[%c0_7, %c0_8] : memref<16x8xf32, #tpu.memory_space<vmem>>, vector<16x8xf32>
    %c0_9 = arith.constant 0 : index
    %c0_10 = arith.constant 0 : index
    %5 = vector.load %arg5[%c0_9, %c0_10] : memref<8x16xf32, #tpu.memory_space<vmem>>, vector<8x16xf32>
    %6 = vector.shape_cast %4 : vector<16x8xf32> to vector<1x16x8xf32>
    %7 = vector.shape_cast %6 : vector<1x16x8xf32> to vector<1x16x8xf32>
    %8 = vector.broadcast %7 : vector<1x16x8xf32> to vector<8x16x8xf32>
    %cst = arith.constant dense<0.000000e+00> : vector<8x16x8xf32>
    %9 = tpu.matmul %8, %3, %cst {dimension_numbers = #tpu.dot_dimension_numbers<[2], [1], [1], [2], [0, 0, 0, 1, 1, 2], [0], [0]>} : vector<8x16x8xf32>, vector<8x8x8xf32>, vector<8x16x8xf32> -> vector<8x16x8xf32>
    %10 = vector.shape_cast %9 : vector<8x16x8xf32> to vector<128x8xf32>
    %cst_11 = arith.constant dense<0.000000e+00> : vector<128x16xf32>
    %11 = tpu.matmul %10, %5, %cst_11 {dimension_numbers = #tpu.dot_dimension_numbers<[1], [0], [0], [1], [0, 0, 1, 1], [], []>} : vector<128x8xf32>, vector<8x16xf32>, vector<128x16xf32> -> vector<128x16xf32>
    %12 = vector.shape_cast %11 : vector<128x16xf32> to vector<8x16x16xf32>
    %13 = vector.extract_strided_slice %12 {offsets = [0, 0, 0], sizes = [4, 16, 16], strides = [1, 1, 1]} : vector<8x16x16xf32> to vector<4x16x16xf32>
    %14 = vector.extract_strided_slice %12 {offsets = [4, 0, 0], sizes = [4, 16, 16], strides = [1, 1, 1]} : vector<8x16x16xf32> to vector<4x16x16xf32>
    %c0_12 = arith.constant 0 : index
    %c0_13 = arith.constant 0 : index
    %15 = vector.load %arg8[%c0_12, %c0_13] : memref<4x1xf32, #tpu.memory_space<vmem>>, vector<4x1xf32>
    %16 = vector.shape_cast %15 : vector<4x1xf32> to vector<4x1x1xf32>
    %17 = vector.broadcast %16 : vector<4x1x1xf32> to vector<4x16x16xf32>
    %18 = arith.addf %14, %17 : vector<4x16x16xf32>
    %c0_14 = arith.constant 0 : index
    %c0_15 = arith.constant 0 : index
    %19 = vector.load %arg6[%c0_14, %c0_15] : memref<4x4xf32, #tpu.memory_space<vmem>>, vector<4x4xf32>
    %c0_16 = arith.constant 0 : index
    %c0_17 = arith.constant 0 : index
    %20 = vector.load %arg7[%c0_16, %c0_17] : memref<4x1xf32, #tpu.memory_space<vmem>>, vector<4x1xf32>
    %21 = vector.shape_cast %20 : vector<4x1xf32> to vector<4x1x1xf32>
    %cst_18 = arith.constant 0.000000e+00 : f32
    %22 = vector.broadcast %cst_18 : f32 to vector<4x16x16xf32>
    %23 = vector.broadcast %21 : vector<4x1x1xf32> to vector<4x16x16xf32>
    %24 = arith.addf %22, %23 : vector<4x16x16xf32>
    %25 = vector.extract_strided_slice %19 {offsets = [0, 0], sizes = [4, 1], strides = [1, 1]} : vector<4x4xf32> to vector<4x1xf32>
    %26 = vector.shape_cast %25 : vector<4x1xf32> to vector<4x1x1xf32>
    %27 = vector.extract_strided_slice %1 {offsets = [0, 0, 0], sizes = [1, 16, 16], strides = [1, 1, 1]} : vector<4x16x16xf32> to vector<1x16x16xf32>
    %28 = vector.broadcast %26 : vector<4x1x1xf32> to vector<4x16x16xf32>
    %29 = vector.broadcast %27 : vector<1x16x16xf32> to vector<4x16x16xf32>
    %30 = arith.mulf %28, %29 : vector<4x16x16xf32>
    %31 = arith.addf %24, %30 : vector<4x16x16xf32>
    %32 = vector.extract_strided_slice %19 {offsets = [0, 1], sizes = [4, 1], strides = [1, 1]} : vector<4x4xf32> to vector<4x1xf32>
    %33 = vector.shape_cast %32 : vector<4x1xf32> to vector<4x1x1xf32>
    %34 = vector.extract_strided_slice %1 {offsets = [1, 0, 0], sizes = [1, 16, 16], strides = [1, 1, 1]} : vector<4x16x16xf32> to vector<1x16x16xf32>
    %35 = vector.broadcast %33 : vector<4x1x1xf32> to vector<4x16x16xf32>
    %36 = vector.broadcast %34 : vector<1x16x16xf32> to vector<4x16x16xf32>
    %37 = arith.mulf %35, %36 : vector<4x16x16xf32>
    %38 = arith.addf %31, %37 : vector<4x16x16xf32>
    %39 = vector.extract_strided_slice %19 {offsets = [0, 2], sizes = [4, 1], strides = [1, 1]} : vector<4x4xf32> to vector<4x1xf32>
    %40 = vector.shape_cast %39 : vector<4x1xf32> to vector<4x1x1xf32>
    %41 = vector.extract_strided_slice %1 {offsets = [2, 0, 0], sizes = [1, 16, 16], strides = [1, 1, 1]} : vector<4x16x16xf32> to vector<1x16x16xf32>
    %42 = vector.broadcast %40 : vector<4x1x1xf32> to vector<4x16x16xf32>
    %43 = vector.broadcast %41 : vector<1x16x16xf32> to vector<4x16x16xf32>
    %44 = arith.mulf %42, %43 : vector<4x16x16xf32>
    %45 = arith.addf %38, %44 : vector<4x16x16xf32>
    %46 = vector.extract_strided_slice %19 {offsets = [0, 3], sizes = [4, 1], strides = [1, 1]} : vector<4x4xf32> to vector<4x1xf32>
    %47 = vector.shape_cast %46 : vector<4x1xf32> to vector<4x1x1xf32>
    %48 = vector.extract_strided_slice %1 {offsets = [3, 0, 0], sizes = [1, 16, 16], strides = [1, 1, 1]} : vector<4x16x16xf32> to vector<1x16x16xf32>
    %49 = vector.broadcast %47 : vector<4x1x1xf32> to vector<4x16x16xf32>
    %50 = vector.broadcast %48 : vector<1x16x16xf32> to vector<4x16x16xf32>
    %51 = arith.mulf %49, %50 : vector<4x16x16xf32>
    %52 = arith.addf %45, %51 : vector<4x16x16xf32>
    %53 = arith.addf %52, %18 : vector<4x16x16xf32>
    %cst_19 = arith.constant 0.000000e+00 : f32
    %54 = vector.broadcast %cst_19 : f32 to vector<4x16x16xf32>
    %55 = arith.subf %54, %53 : vector<4x16x16xf32>
    %56 = math.exp %55 : vector<4x16x16xf32>
    %cst_20 = arith.constant 1.000000e+00 : f32
    %57 = vector.broadcast %cst_20 : f32 to vector<4x16x16xf32>
    %58 = arith.addf %57, %56 : vector<4x16x16xf32>
    %cst_21 = arith.constant 1.000000e+00 : f32
    %59 = vector.broadcast %cst_21 : f32 to vector<4x16x16xf32>
    %60 = arith.divf %59, %58 : vector<4x16x16xf32>
    %61 = arith.subf %1, %13 : vector<4x16x16xf32>
    %62 = arith.mulf %60, %61 : vector<4x16x16xf32>
    %63 = arith.addf %13, %62 : vector<4x16x16xf32>
    %c0_22 = arith.constant 0 : index
    %c0_23 = arith.constant 0 : index
    %c0_24 = arith.constant 0 : index
    %c0_25 = arith.constant 0 : index
    %64 = vector.load %arg9[%c0_22, %c0_23, %c0_24, %c0_25] : memref<1x4x16x16xf32, #tpu.memory_space<vmem>>, vector<1x4x16x16xf32>
    %65 = vector.shape_cast %64 : vector<1x4x16x16xf32> to vector<4x16x16xf32>
    %66 = vector.shape_cast %63 : vector<4x16x16xf32> to vector<1x4x16x16xf32>
    tpu.vector_store %arg9[%c0_22, %c0_23, %c0_24, %c0_25], %66 {strides = array<i32>} : memref<1x4x16x16xf32, #tpu.memory_space<vmem>>, vector<1x4x16x16xf32>,
    return
  }
  func.func @transform_0(%arg0: i32, %arg1: i32) -> (i32, i32, i32, i32) {
    %c0_i32 = arith.constant 0 : i32
    %c0_i32_0 = arith.constant 0 : i32
    %c0_i32_1 = arith.constant 0 : i32
    return %arg0, %c0_i32, %arg1, %c0_i32_0 : i32, i32, i32, i32
  }
  func.func @transform_1(%arg0: i32, %arg1: i32) -> (i32, i32, i32, i32) {
    %c0_i32 = arith.constant 0 : i32
    %c0_i32_0 = arith.constant 0 : i32
    %c0_i32_1 = arith.constant 0 : i32
    %c0_i32_2 = arith.constant 0 : i32
    return %arg0, %c0_i32, %c0_i32_0, %c0_i32_1 : i32, i32, i32, i32
  }
  func.func @transform_2(%arg0: i32, %arg1: i32) -> (i32, i32) {
    %c0_i32 = arith.constant 0 : i32
    %c0_i32_0 = arith.constant 0 : i32
    return %arg1, %c0_i32 : i32, i32
  }
  func.func @transform_3(%arg0: i32, %arg1: i32) -> (i32, i32) {
    %c0_i32 = arith.constant 0 : i32
    %c0_i32_0 = arith.constant 0 : i32
    %c0_i32_1 = arith.constant 0 : i32
    return %c0_i32, %c0_i32_0 : i32, i32
  }
  func.func @transform_4(%arg0: i32, %arg1: i32) -> (i32, i32) {
    %c0_i32 = arith.constant 0 : i32
    %c0_i32_0 = arith.constant 0 : i32
    %c0_i32_1 = arith.constant 0 : i32
    return %c0_i32, %c0_i32_0 : i32, i32
  }
  func.func @transform_5(%arg0: i32, %arg1: i32) -> (i32, i32) {
    %c0_i32 = arith.constant 0 : i32
    %c0_i32_0 = arith.constant 0 : i32
    %c0_i32_1 = arith.constant 0 : i32
    return %c0_i32, %c0_i32_0 : i32, i32
  }
  func.func @transform_6(%arg0: i32, %arg1: i32) -> (i32, i32) {
    %c0_i32 = arith.constant 0 : i32
    %c0_i32_0 = arith.constant 0 : i32
    %c0_i32_1 = arith.constant 0 : i32
    return %c0_i32, %c0_i32_0 : i32, i32
  }
  func.func @transform_7(%arg0: i32, %arg1: i32) -> (i32, i32, i32, i32) {
    %c0_i32 = arith.constant 0 : i32
    %c0_i32_0 = arith.constant 0 : i32
    %c0_i32_1 = arith.constant 0 : i32
    return %arg0, %c0_i32, %arg1, %c0_i32_0 : i32, i32, i32, i32
  }
}

</mosaic_0001>

<llo_original>
// kernel: tpu_custom_call.1
$region0: #{tpu_custom_call.1}
  #allocation0 [shape = 'u32[]', space=smem, size = 0x4, offset = 0x4, fixed_abs, tag = 'smem constant byte address 0x4 - core index']
  #allocation1 [shape = 'u32[144,128]{1,0:T(1,128)}', space=vmem, size = 0x12000, scoped, tag = 'internal scratch']
  %s0 = inlined_call_operand.hbm [shape: f32[2,4,16,16], index: 0, kind: input, shape index: {}]
  %s1 = inlined_call_operand.hbm [shape: f32[2,8,8,8], index: 1, kind: input, shape index: {}]
  %s2 = inlined_call_operand.vmem [shape: f32[16,8], index: 2, kind: input, shape index: {}]
  %s3 = inlined_call_operand.vmem [shape: f32[8,16], index: 3, kind: input, shape index: {}]
  %s4 = inlined_call_operand.vmem [shape: f32[4,4], index: 4, kind: input, shape index: {}]
  %s5 = inlined_call_operand.vmem [shape: f32[4,1], index: 5, kind: input, shape index: {}]
  %s6 = inlined_call_operand.vmem [shape: f32[4,1], index: 6, kind: input, shape index: {}]
  %s7 = inlined_call_operand.hbm [shape: f32[2,4,16,16], index: 7, kind: output, shape index: {}]
  %s8 = sld [smem:[#allocation0]]
  $region69: #{tpu_custom_call.1} parent=0
    _
  %s10 = ssub.s32 1, %s8
  %s11 = scalar_select 0, %s10, %s8
  $region1: #{tpu_custom_call.1} parent=0
    #allocation2 [shape = 'u8[65536]{0}', space=vmem, size = 0x10000, scoped, tag = 'input window, operand 0']
    #allocation3 [shape = 's32[2]{0}', space=sflag, size = 0x8, scoped, tag = 'scoped memory for tpu_custom_call.1']
    #allocation4 [shape = 's32[2]{0}', space=sflag, size = 0x8, scoped, tag = 'scoped memory for tpu_custom_call.1']
    #allocation5 [shape = 'u8[65536]{0}', space=vmem, size = 0x10000, scoped, tag = 'input window, operand 1']
    #allocation6 [shape = 's32[2]{0}', space=sflag, size = 0x8, scoped, tag = 'scoped memory for tpu_custom_call.1']
    #allocation7 [shape = 'u8[65536]{0}', space=vmem, size = 0x10000, scoped, tag = 'output window, operand 0']
    %12 = vsyncpa [#allocation3], 0
    %s13 = scalar_lea.sflag [#allocation3], 1
    %14 = vsyncpa %s13, 0
    %15 = vsyncpa [#allocation6], 0
    %s16 = scalar_lea.sflag [#allocation6], 1
    %17 = vsyncpa %s16, 0
    %18 = vsyncpa [#allocation4], 0
    %s19 = scalar_lea.sflag [#allocation4], 1
    %20 = vsyncpa %s19, 0
    loop: start=0, step=1, limit=4
    $region2: #{tpu_custom_call.1} parent=1 // loop_pre_header
      _
    $region3: #{tpu_custom_call.1} parent=1 // loop_header
      %s22 = sphi 0, %s26
      %p23 = scmp.ge.s32.totalorder %s22, 4
      %s29 = sphi 0, %s41
      %s30 = sphi 0, %s37
      %s31 = sphi 0, %s29
      %s32 = sphi 0, %s30
      %s33 = sphi 0, %s31
      %s34 = sphi 0, %s32
      %s46 = sphi 0, %s48
      %s49 = sphi 0, %s46
      %s50 = sphi 0, %s49
      %s66 = sphi 0, %s50
      %s72 = sphi 0, %s74
      %s75 = sphi 0, %s72
      %s76 = sphi 0, %s75
      %s92 = sphi 0, %s76
      %s98 = sphi 0, %s100
      %s101 = sphi 0, %s98
      %s102 = sphi 0, %s101
      %s118 = sphi 0, %s102
      %s122 = sphi 0, %s122
      %s124 = sphi 0, %s122
      %s125 = sphi 0, %s124
      %s139 = sphi 0, %s125
      %s143 = sphi 0, %s143
      %s145 = sphi 0, %s143
      %s146 = sphi 0, %s145
      %s160 = sphi 0, %s146
      %s164 = sphi 0, %s164
      %s166 = sphi 0, %s164
      %s167 = sphi 0, %s166
      %s181 = sphi 0, %s167
      %s185 = sphi 0, %s185
      %s187 = sphi 0, %s185
      %s188 = sphi 0, %s187
      %s202 = sphi 0, %s188
      %s210 = sphi 0, %s212
      %s213 = sphi 0, %s210
      %s214 = sphi 0, %s213
      %s230 = sphi 0, %s214
    $region4: #{tpu_custom_call.1} parent=1 // loop_header_branch
      %25 = sbr.rel (%p23) target = $region8
    $region5: #{tpu_custom_call.1} parent=1 // loop_body
      %s27 = ssub.s32 %s22, 1
      %s28 = ssub.s32 %s22, 2
      %s35 = sadd.s32 1, %s30
      %p36 = scmp.ge.s32.totalorder %s35, 1
      %s37 = scalar_select %p36, 0, %s35
      %s38 = sadd.s32 1, %s29
      %s39 = scalar_select %p36, %s38, %s29
      %p40 = scmp.ge.s32.totalorder %s39, 2
      %s41 = scalar_select %p40, 0, %s39
      %s42 = ssub.s32 %s29, %s41
      %s43 = ssub.s32 %s30, %s37
      %s44 = sor.u32 %s42, %s43
      %p45 = scmp.eq.s32.totalorder %s44, 0
      %s47 = sadd.s32 %s46, 1
      %s48 = scalar_select %p45, %s46, %s47
      %p51 = pneg %p45
      %p52 = scmp.eq.s32.totalorder %s22, 1
      %p53 = por %p51, %p52
      %p54 = scmp.ne.s32.totalorder %s46, %s49
      %p55 = scmp.eq.s32.totalorder %s22, 0
      %p56 = por %p54, %p55
      %p57 = scmp.ne.s32.totalorder %s46, %s49
      %p58 = scmp.eq.s32.totalorder %s27, 1
      %p59 = por %p57, %p58
      %p60 = scmp.ne.s32.totalorder %s49, %s50
      %p61 = scmp.eq.s32.totalorder %s27, 0
      %p62 = por %p60, %p61
      %p63 = scmp.ne.s32.totalorder %s49, %s50
      %p64 = scmp.eq.s32.totalorder %s28, 1
      %p65 = por %p63, %p64
      %p67 = scmp.ne.s32.totalorder %s50, %s66
      %p68 = scmp.eq.s32.totalorder %s28, 0
      %p69 = por %p67, %p68
      %s70 = ssub.s32 %s29, %s41
      %p71 = scmp.eq.s32.totalorder %s70, 0
      %s73 = sadd.s32 %s72, 1
      %s74 = scalar_select %p71, %s72, %s73
      %p77 = pneg %p71
      %p78 = scmp.eq.s32.totalorder %s22, 1
      %p79 = por %p77, %p78
      %p80 = scmp.ne.s32.totalorder %s72, %s75
      %p81 = scmp.eq.s32.totalorder %s22, 0
      %p82 = por %p80, %p81
      %p83 = scmp.ne.s32.totalorder %s72, %s75
      %p84 = scmp.eq.s32.totalorder %s27, 1
      %p85 = por %p83, %p84
      %p86 = scmp.ne.s32.totalorder %s75, %s76
      %p87 = scmp.eq.s32.totalorder %s27, 0
      %p88 = por %p86, %p87
      %p89 = scmp.ne.s32.totalorder %s75, %s76
      %p90 = scmp.eq.s32.totalorder %s28, 1
      %p91 = por %p89, %p90
      %p93 = scmp.ne.s32.totalorder %s76, %s92
      %p94 = scmp.eq.s32.totalorder %s28, 0
      %p95 = por %p93, %p94
      %s96 = ssub.s32 %s30, %s37
      %p97 = scmp.eq.s32.totalorder %s96, 0
      %s99 = sadd.s32 %s98, 1
      %s100 = scalar_select %p97, %s98, %s99
      %p103 = pneg %p97
      %p104 = scmp.eq.s32.totalorder %s22, 1
      %p105 = por %p103, %p104
      %p106 = scmp.ne.s32.totalorder %s98, %s101
      %p107 = scmp.eq.s32.totalorder %s22, 0
      %p108 = por %p106, %p107
      %p109 = scmp.ne.s32.totalorder %s98, %s101
      %p110 = scmp.eq.s32.totalorder %s27, 1
      %p111 = por %p109, %p110
      %p112 = scmp.ne.s32.totalorder %s101, %s102
      %p113 = scmp.eq.s32.totalorder %s27, 0
      %p114 = por %p112, %p113
      %p115 = scmp.ne.s32.totalorder %s101, %s102
      %p116 = scmp.eq.s32.totalorder %s28, 1
      %p117 = por %p115, %p116
      %p119 = scmp.ne.s32.totalorder %s102, %s118
      %p120 = scmp.eq.s32.totalorder %s28, 0
      %p121 = por %p119, %p120
      %s123 = sadd.s32 %s122, 1
      %p126 = scmp.eq.s32.totalorder %s22, 1
      %p127 = scmp.ne.s32.totalorder %s122, %s124
      %p128 = scmp.eq.s32.totalorder %s22, 0
      %p129 = por %p127, %p128
      %p130 = scmp.ne.s32.totalorder %s122, %s124
      %p131 = scmp.eq.s32.totalorder %s27, 1
      %p132 = por %p130, %p131
      %p133 = scmp.ne.s32.totalorder %s124, %s125
      %p134 = scmp.eq.s32.totalorder %s27, 0
      %p135 = por %p133, %p134
      %p136 = scmp.ne.s32.totalorder %s124, %s125
      %p137 = scmp.eq.s32.totalorder %s28, 1
      %p138 = por %p136, %p137
      %p140 = scmp.ne.s32.totalorder %s125, %s139
      %p141 = scmp.eq.s32.totalorder %s28, 0
      %p142 = por %p140, %p141
      %s144 = sadd.s32 %s143, 1
      %p147 = scmp.eq.s32.totalorder %s22, 1
      %p148 = scmp.ne.s32.totalorder %s143, %s145
      %p149 = scmp.eq.s32.totalorder %s22, 0
      %p150 = por %p148, %p149
      %p151 = scmp.ne.s32.totalorder %s143, %s145
      %p152 = scmp.eq.s32.totalorder %s27, 1
      %p153 = por %p151, %p152
      %p154 = scmp.ne.s32.totalorder %s145, %s146
      %p155 = scmp.eq.s32.totalorder %s27, 0
      %p156 = por %p154, %p155
      %p157 = scmp.ne.s32.totalorder %s145, %s146
      %p158 = scmp.eq.s32.totalorder %s28, 1
      %p159 = por %p157, %p158
      %p161 = scmp.ne.s32.totalorder %s146, %s160
      %p162 = scmp.eq.s32.totalorder %s28, 0
      %p163 = por %p161, %p162
      %s165 = sadd.s32 %s164, 1
      %p168 = scmp.eq.s32.totalorder %s22, 1
      %p169 = scmp.ne.s32.totalorder %s164, %s166
      %p170 = scmp.eq.s32.totalorder %s22, 0
      %p171 = por %p169, %p170
      %p172 = scmp.ne.s32.totalorder %s164, %s166
      %p173 = scmp.eq.s32.totalorder %s27, 1
      %p174 = por %p172, %p173
      %p175 = scmp.ne.s32.totalorder %s166, %s167
      %p176 = scmp.eq.s32.totalorder %s27, 0
      %p177 = por %p175, %p176
      %p178 = scmp.ne.s32.totalorder %s166, %s167
      %p179 = scmp.eq.s32.totalorder %s28, 1
      %p180 = por %p178, %p179
      %p182 = scmp.ne.s32.totalorder %s167, %s181
      %p183 = scmp.eq.s32.totalorder %s28, 0
      %p184 = por %p182, %p183
      %s186 = sadd.s32 %s185, 1
      %p189 = scmp.eq.s32.totalorder %s22, 1
      %p190 = scmp.ne.s32.totalorder %s185, %s187
      %p191 = scmp.eq.s32.totalorder %s22, 0
      %p192 = por %p190, %p191
      %p193 = scmp.ne.s32.totalorder %s185, %s187
      %p194 = scmp.eq.s32.totalorder %s27, 1
      %p195 = por %p193, %p194
      %p196 = scmp.ne.s32.totalorder %s187, %s188
      %p197 = scmp.eq.s32.totalorder %s27, 0
      %p198 = por %p196, %p197
      %p199 = scmp.ne.s32.totalorder %s187, %s188
      %p200 = scmp.eq.s32.totalorder %s28, 1
      %p201 = por %p199, %p200
      %p203 = scmp.ne.s32.totalorder %s188, %s202
      %p204 = scmp.eq.s32.totalorder %s28, 0
      %p205 = por %p203, %p204
      %s206 = ssub.s32 %s29, %s41
      %s207 = ssub.s32 %s30, %s37
      %s208 = sor.u32 %s206, %s207
      %p209 = scmp.eq.s32.totalorder %s208, 0
      %s211 = sadd.s32 %s210, 1
      %s212 = scalar_select %p209, %s210, %s211
      %p215 = pneg %p209
      %p216 = scmp.eq.s32.totalorder %s22, 1
      %p217 = por %p215, %p216
      %p218 = scmp.ne.s32.totalorder %s210, %s213
      %p219 = scmp.eq.s32.totalorder %s22, 0
      %p220 = por %p218, %p219
      %p221 = scmp.ne.s32.totalorder %s210, %s213
      %p222 = scmp.eq.s32.totalorder %s27, 1
      %p223 = por %p221, %p222
      %p224 = scmp.ne.s32.totalorder %s213, %s214
      %p225 = scmp.eq.s32.totalorder %s27, 0
      %p226 = por %p224, %p225
      %p227 = scmp.ne.s32.totalorder %s213, %s214
      %p228 = scmp.eq.s32.totalorder %s28, 1
      %p229 = por %p227, %p228
      %p231 = scmp.ne.s32.totalorder %s214, %s230
      %p232 = scmp.eq.s32.totalorder %s28, 0
      %p233 = por %p231, %p232
      %p234 = scmp.le.s32.totalorder 1, %s22
      %p235 = scmp.lt.s32.totalorder %s22, 3
      %p236 = pnand %p234, %p235
      %p237 = pneg %p236
      // Predicated region
      $region9: #{tpu_custom_call.1} parent=5 // pred_check
        _
      $region10: #{tpu_custom_call.1} parent=5 // pred_check_branch
        %239 = sbr.rel (%p236) target = $region12
      $region11: #{tpu_custom_call.1} parent=5 // pred_region
        %s240 = ssub.s32 %s22, 1
        // Predicated region
        $region13: #{tpu_custom_call.1} parent=11 // pred_check
          %p241 = pneg %p114
        $region14: #{tpu_custom_call.1} parent=11 // pred_check_branch
          %243 = sbr.rel (%p241) target = $region16
        $region15: #{tpu_custom_call.1} parent=11 // pred_region
          %s244 = smul.u32 2, %s32
          %p245 = scmp.lt.s32.totalorder %s244, 1
          %s246 = scalar_select %p245, %s244, 1
          %s247 = smul.addr %s246, 8
          %s248 = scalar_lea.vmem %s2, %s247
          %s249 = smul.u32 2, %s32
        $region16: #{tpu_custom_call.1} parent=11 // pred_fallthru
          _
        // Predicated region
        $region17: #{tpu_custom_call.1} parent=11 // pred_check
          %p250 = pneg %p135
        $region18: #{tpu_custom_call.1} parent=11 // pred_check_branch
          %252 = sbr.rel (%p250) target = $region20
        $region19: #{tpu_custom_call.1} parent=11 // pred_region
          _
        $region20: #{tpu_custom_call.1} parent=11 // pred_fallthru
          _
        // Predicated region
        $region21: #{tpu_custom_call.1} parent=11 // pred_check
          %p253 = pneg %p156
        $region22: #{tpu_custom_call.1} parent=11 // pred_check_branch
          %255 = sbr.rel (%p253) target = $region24
        $region23: #{tpu_custom_call.1} parent=11 // pred_region
          _
        $region24: #{tpu_custom_call.1} parent=11 // pred_fallthru
          _
        // Predicated region
        $region25: #{tpu_custom_call.1} parent=11 // pred_check
          %p256 = pneg %p177
        $region26: #{tpu_custom_call.1} parent=11 // pred_check_branch
          %258 = sbr.rel (%p256) target = $region28
        $region27: #{tpu_custom_call.1} parent=11 // pred_region
          _
        $region28: #{tpu_custom_call.1} parent=11 // pred_fallthru
          _
        // Predicated region
        $region29: #{tpu_custom_call.1} parent=11 // pred_check
          %p259 = pneg %p198
        $region30: #{tpu_custom_call.1} parent=11 // pred_check_branch
          %261 = sbr.rel (%p259) target = $region32
        $region31: #{tpu_custom_call.1} parent=11 // pred_region
          _
        $region32: #{tpu_custom_call.1} parent=11 // pred_fallthru
          _
      $region12: #{tpu_custom_call.1} parent=5 // pred_fallthru
        _
      %p262 = scmp.lt.s32.totalorder %s22, 2
      // Predicated region
      $region33: #{tpu_custom_call.1} parent=5 // pred_check
        %p263 = pneg %p262
      $region34: #{tpu_custom_call.1} parent=5 // pred_check_branch
        %265 = sbr.rel (%p263) target = $region36
      $region35: #{tpu_custom_call.1} parent=5 // pred_region
        // Predicated region
        $region37: #{tpu_custom_call.1} parent=35 // pred_check
          %p266 = pneg %p56
        $region38: #{tpu_custom_call.1} parent=35 // pred_check_branch
          %268 = sbr.rel (%p266) target = $region40
        $region39: #{tpu_custom_call.1} parent=35 // pred_region
          %s269 = sand.u32 %s46, 1
          %s270 = scalar_lea.sflag [#allocation3], %s269
          %s271 = sand.u32 %s46, 1
          %s272 = smul.addr %s271, 64
          %s273 = scalar_lea.vmem [#allocation2], %s272
          %s274 = smul.u32 2, %s30
          %s276 = ssub.s32 1024, 1024
          %277 = vsyncadd %s270, %s276
          %s278 = smul.addr %s29, 8
          %s279 = sadd.s32 %s274, %s278
          %s280 = smul.addr %s279, 128
          %s281 = scalar_lea.hbm %s0, %s280
          %s282 = sshll.u32 %s273, 4
          %s283 = int_to_ptr.vmem [resolvable:$true] %s282
          %288 = dma.hbm_to_vmem [thread:$0]  %s281, 1024, %s283, %s270, 128, 128, 8
        $region40: #{tpu_custom_call.1} parent=35 // pred_fallthru
          _
        // Predicated region
        $region41: #{tpu_custom_call.1} parent=35 // pred_check
          %p289 = pneg %p82
        $region42: #{tpu_custom_call.1} parent=35 // pred_check_branch
          %291 = sbr.rel (%p289) target = $region44
        $region43: #{tpu_custom_call.1} parent=35 // pred_region
          %s292 = sand.u32 %s72, 1
          %s293 = scalar_lea.sflag [#allocation6], %s292
          %s294 = sand.u32 %s72, 1
          %s295 = smul.addr %s294, 64
          %s296 = scalar_lea.vmem [#allocation5], %s295
          %s298 = ssub.s32 1024, 1024
          %299 = vsyncadd %s293, %s298
          %s300 = smul.addr %s29, 8
          %s301 = smul.addr %s300, 128
          %s302 = scalar_lea.hbm %s1, %s301
          %s303 = sshll.u32 %s296, 4
          %s304 = int_to_ptr.vmem [resolvable:$true] %s303
          %309 = dma.hbm_to_vmem [thread:$0]  %s302, 1024, %s304, %s293, 128, 128, 8
        $region44: #{tpu_custom_call.1} parent=35 // pred_fallthru
          _
      $region36: #{tpu_custom_call.1} parent=5 // pred_fallthru
        _
      %p310 = scmp.le.s32.totalorder 1, %s22
      %p311 = scmp.lt.s32.totalorder %s22, 3
      %p312 = pnand %p310, %p311
      %p313 = pneg %p312
      // Predicated region
      $region45: #{tpu_custom_call.1} parent=5 // pred_check
        _
      $region46: #{tpu_custom_call.1} parent=5 // pred_check_branch
        %315 = sbr.rel (%p312) target = $region48
      $region47: #{tpu_custom_call.1} parent=5 // pred_region
        %s316 = ssub.s32 %s22, 1
        %s317 = sand.u32 %s49, 1
        %s318 = scalar_lea.sflag [#allocation3], %s317
        %s319 = sand.u32 %s49, 1
        %s320 = smul.addr %s319, 64
        %s321 = scalar_lea.vmem [#allocation2], %s320
        // Predicated region
        $region49: #{tpu_custom_call.1} parent=47 // pred_check
          %p322 = pneg %p62
        $region50: #{tpu_custom_call.1} parent=47 // pred_check_branch
          %324 = sbr.rel (%p322) target = $region52
        $region51: #{tpu_custom_call.1} parent=47 // pred_region
          %325 = dma.done %s318, 1024
        $region52: #{tpu_custom_call.1} parent=47 // pred_fallthru
          _
        %s326 = sand.u32 %s75, 1
        %s327 = scalar_lea.sflag [#allocation6], %s326
        %s328 = sand.u32 %s75, 1
        %s329 = smul.addr %s328, 64
        %s330 = scalar_lea.vmem [#allocation5], %s329
        // Predicated region
        $region53: #{tpu_custom_call.1} parent=47 // pred_check
          %p331 = pneg %p88
        $region54: #{tpu_custom_call.1} parent=47 // pred_check_branch
          %333 = sbr.rel (%p331) target = $region56
        $region55: #{tpu_custom_call.1} parent=47 // pred_region
          %334 = dma.done %s327, 1024
        $region56: #{tpu_custom_call.1} parent=47 // pred_fallthru
          _
        %s335 = sand.u32 %s49, 1
        %s336 = scalar_lea.sflag [#allocation3], %s335
        %s337 = sand.u32 %s49, 1
        %s338 = smul.addr %s337, 64
        %s339 = scalar_lea.vmem [#allocation2], %s338
        %p340 = pneg %p62
        %p341 = pneg %p59
        %s342 = sand.u32 %s75, 1
        %s343 = scalar_lea.sflag [#allocation6], %s342
        %s344 = sand.u32 %s75, 1
        %s345 = smul.addr %s344, 64
        %s346 = scalar_lea.vmem [#allocation5], %s345
        %p347 = pneg %p88
        %p348 = pneg %p85
        %s349 = smul.u32 2, %s32
        %p350 = scmp.lt.s32.totalorder %s349, 1
        %s351 = scalar_select %p350, %s349, 1
        %s352 = smul.addr %s351, 8
        %s353 = scalar_lea.vmem %s2, %s352
        %p354 = pneg %p114
        %p355 = pneg %p111
        %p356 = pneg %p135
        %p357 = pneg %p132
        %p358 = pneg %p156
        %p359 = pneg %p153
        %p360 = pneg %p177
        %p361 = pneg %p174
        %p362 = pneg %p198
        %p363 = pneg %p195
        %p364 = pneg %p226
        %p365 = pneg %p223
        %s366 = sand.u32 %s213, 1
        %s367 = scalar_lea.sflag [#allocation4], %s366
        %s368 = sand.u32 %s213, 1
        %s369 = smul.addr %s368, 64
        %s370 = scalar_lea.vmem [#allocation7], %s369
        %s371 = smul.u32 2, %s32
        %s372 = smul.u32 2, %s32
        %p373 = scmp.lt.s32.totalorder %s372, 1
        %s374 = scalar_select %p373, %s372, 1
        %s375 = smul.addr %s374, 8
        %s376 = scalar_lea.vmem %s2, %s375
        %s377 = smul.u32 2, %s32
        %s378 = smul.u32 2, %s32
        %v379 = vld [vmem:[%s321] sm:$0xff]
        %v380 = vld [vmem:[%s321 + $0x8] sm:$0xff]
        %v381 = vld [vmem:[%s321 + $0x10] sm:$0xff]
        %v382 = vld [vmem:[%s321 + $0x18] sm:$0xff]
        %v383 = vld [vmem:[%s321 + $0x20] sm:$0xff]
        %v384 = vld [vmem:[%s321 + $0x28] sm:$0xff]
        %v385 = vld [vmem:[%s321 + $0x30] sm:$0xff]
        %v386 = vld [vmem:[%s321 + $0x38] sm:$0xff]
        %v387 = vld [vmem:[%s330] sm:$0xff]
        %v388 = vld [vmem:[%s330 + $0x8] sm:$0xff]
        %v389 = vld [vmem:[%s330 + $0x10] sm:$0xff]
        %v390 = vld [vmem:[%s330 + $0x18] sm:$0xff]
        %v391 = vld [vmem:[%s330 + $0x20] sm:$0xff]
        %v392 = vld [vmem:[%s330 + $0x28] sm:$0xff]
        %v393 = vld [vmem:[%s330 + $0x30] sm:$0xff]
        %v394 = vld [vmem:[%s330 + $0x38] sm:$0xff]
        %v395 = vld [vmem:[%s376] sm:$0xff]
        %v396 = vld [vmem:[%s376 + $0x8] sm:$0xff]
        %v397 = vld [vmem:[%s3] sm:$0xff]
        %vm398 = vcmask 64512
        %v400 = vsel %vm398, %v395, 0
        %v403 = vsel %vm398, %v396, 0
        %405 = vmatprep.subr.mxu0 0.0
        %406 = vmatpush1.msra.mxu0 %v387
        %407 = vmatprep.subr.mxu0 0.0
        %408 = vmatpush1.msra.mxu0 0.0
        %409 = vmatprep.subr.mxu0 0.0
        %410 = vmatpush1.msra.mxu0 0.0
        %411 = vmatprep.subr.mxu0 0.0
        %412 = vmatpush1.msra.mxu0 0.0
        %413 = vmatprep.subr.mxu0 0.0
        %414 = vmatpush1.msra.mxu0 0.0
        %415 = vmatprep.subr.mxu0 0.0
        %416 = vmatpush1.msra.mxu0 0.0
        %417 = vmatprep.subr.mxu0 0.0
        %418 = vmatpush1.msra.mxu0 0.0
        %419 = vmatprep.subr.mxu0 0.0
        %420 = vmatpush1.msra.mxu0 0.0
        %421 = vmatprep.subr.mxu0 0.0
        %422 = vmatpush1.msra.mxu0 0.0
        %423 = vmatprep.subr.mxu0 0.0
        %424 = vmatpush1.msra.mxu0 0.0
        %425 = vmatprep.subr.mxu0 0.0
        %426 = vmatpush1.msra.mxu0 0.0
        %427 = vmatprep.subr.mxu0 0.0
        %428 = vmatpush1.msra.mxu0 0.0
        %429 = vmatprep.subr.mxu0 0.0
        %430 = vmatpush1.msra.mxu0 0.0
        %431 = vmatprep.subr.mxu0 0.0
        %432 = vmatpush1.msra.mxu0 0.0
        %433 = vmatprep.subr.mxu0 0.0
        %434 = vmatpush1.msra.mxu0 0.0
        %435 = vmatprep.subr.mxu0 0.0
        %436 = vmatpush1.msra.mxu0 0.0
        %437 = vmatprep.subr.mxu0 0.0
        %438 = vmatpush1.msra.mxu0 0.0
        %439 = vmatprep.subr.mxu0 0.0
        %440 = vmatpush1.msra.mxu0 0.0
        %441 = vmatprep.subr.mxu0 0.0
        %442 = vmatpush1.msra.mxu0 0.0
        %443 = vmatprep.subr.mxu0 0.0
        %444 = vmatpush1.msra.mxu0 0.0
        %445 = vmatprep.subr.mxu0 0.0
        %446 = vmatpush1.msra.mxu0 0.0
        %447 = vmatprep.subr.mxu0 0.0
        %448 = vmatpush1.msra.mxu0 0.0
        %449 = vmatprep.subr.mxu0 0.0
        %450 = vmatpush1.msra.mxu0 0.0
        %451 = vmatprep.subr.mxu0 0.0
        %452 = vmatpush1.msra.mxu0 0.0
        %453 = vmatprep.subr.mxu0 0.0
        %454 = vmatpush1.msra.mxu0 0.0
        %455 = vmatprep.subr.mxu0 0.0
        %456 = vmatpush1.msra.mxu0 0.0
        %457 = vmatprep.subr.mxu0 0.0
        %458 = vmatpush1.msra.mxu0 0.0
        %459 = vmatprep.subr.mxu0 0.0
        %460 = vmatpush1.msra.mxu0 0.0
        %461 = vmatprep.subr.mxu0 0.0
        %462 = vmatpush1.msra.mxu0 0.0
        %463 = vmatprep.subr.mxu0 0.0
        %464 = vmatpush1.msra.mxu0 0.0
        %465 = vmatprep.subr.mxu0 0.0
        %466 = vmatpush1.msra.mxu0 0.0
        %467 = vmatprep.subr.mxu0 0.0
        %468 = vmatpush1.msra.mxu0 0.0
        %469 = vmatprep.mubr.f32.mxu0 0.0
        %470 = vmatmul.mubr.f32.gmra.mrb[0].mxu0 %v400
        %v471 = vpop.f32.mrb[0].mxu0
        %v472 = vadd.f32 0.0, %v471
        %v473 = vpop.f32.mrb[0].mxu0
        %474 = vmatprep.mubr.f32.mxu0 0.0
        %475 = vmatmul.mubr.f32.gmra.mrb[0].mxu0 %v403
        %v476 = vpop.f32.mrb[0].mxu0
        %v477 = vadd.f32 0.0, %v476
        %v478 = vpop.f32.mrb[0].mxu0
        %479 = vdwg.mxu0
        %480 = vmatprep.subr.mxu0 0.0
        %481 = vmatpush1.msra.mxu0 %v388
        %482 = vmatprep.subr.mxu0 0.0
        %483 = vmatpush1.msra.mxu0 0.0
        %484 = vmatprep.subr.mxu0 0.0
        %485 = vmatpush1.msra.mxu0 0.0
        %486 = vmatprep.subr.mxu0 0.0
        %487 = vmatpush1.msra.mxu0 0.0
        %488 = vmatprep.subr.mxu0 0.0
        %489 = vmatpush1.msra.mxu0 0.0
        %490 = vmatprep.subr.mxu0 0.0
        %491 = vmatpush1.msra.mxu0 0.0
        %492 = vmatprep.subr.mxu0 0.0
        %493 = vmatpush1.msra.mxu0 0.0
        %494 = vmatprep.subr.mxu0 0.0
        %495 = vmatpush1.msra.mxu0 0.0
        %496 = vmatprep.subr.mxu0 0.0
        %497 = vmatpush1.msra.mxu0 0.0
        %498 = vmatprep.subr.mxu0 0.0
        %499 = vmatpush1.msra.mxu0 0.0
        %500 = vmatprep.subr.mxu0 0.0
        %501 = vmatpush1.msra.mxu0 0.0
        %502 = vmatprep.subr.mxu0 0.0
        %503 = vmatpush1.msra.mxu0 0.0
        %504 = vmatprep.subr.mxu0 0.0
        %505 = vmatpush1.msra.mxu0 0.0
        %506 = vmatprep.subr.mxu0 0.0
        %507 = vmatpush1.msra.mxu0 0.0
        %508 = vmatprep.subr.mxu0 0.0
        %509 = vmatpush1.msra.mxu0 0.0
        %510 = vmatprep.subr.mxu0 0.0
        %511 = vmatpush1.msra.mxu0 0.0
        %512 = vmatprep.subr.mxu0 0.0
        %513 = vmatpush1.msra.mxu0 0.0
        %514 = vmatprep.subr.mxu0 0.0
        %515 = vmatpush1.msra.mxu0 0.0
        %516 = vmatprep.subr.mxu0 0.0
        %517 = vmatpush1.msra.mxu0 0.0
        %518 = vmatprep.subr.mxu0 0.0
        %519 = vmatpush1.msra.mxu0 0.0
        %520 = vmatprep.subr.mxu0 0.0
        %521 = vmatpush1.msra.mxu0 0.0
        %522 = vmatprep.subr.mxu0 0.0
        %523 = vmatpush1.msra.mxu0 0.0
        %524 = vmatprep.subr.mxu0 0.0
        %525 = vmatpush1.msra.mxu0 0.0
        %526 = vmatprep.subr.mxu0 0.0
        %527 = vmatpush1.msra.mxu0 0.0
        %528 = vmatprep.subr.mxu0 0.0
        %529 = vmatpush1.msra.mxu0 0.0
        %530 = vmatprep.subr.mxu0 0.0
        %531 = vmatpush1.msra.mxu0 0.0
        %532 = vmatprep.subr.mxu0 0.0
        %533 = vmatpush1.msra.mxu0 0.0
        %534 = vmatprep.subr.mxu0 0.0
        %535 = vmatpush1.msra.mxu0 0.0
        %536 = vmatprep.subr.mxu0 0.0
        %537 = vmatpush1.msra.mxu0 0.0
        %538 = vmatprep.subr.mxu0 0.0
        %539 = vmatpush1.msra.mxu0 0.0
        %540 = vmatprep.subr.mxu0 0.0
        %541 = vmatpush1.msra.mxu0 0.0
        %542 = vmatprep.subr.mxu0 0.0
        %543 = vmatpush1.msra.mxu0 0.0
        %544 = vmatprep.mubr.f32.mxu0 0.0
        %545 = vmatmul.mubr.f32.gmra.mrb[0].mxu0 %v400
        %v546 = vpop.f32.mrb[0].mxu0
        %v547 = vadd.f32 0.0, %v546
        %v548 = vpop.f32.mrb[0].mxu0
        %549 = vmatprep.mubr.f32.mxu0 0.0
        %550 = vmatmul.mubr.f32.gmra.mrb[0].mxu0 %v403
        %v551 = vpop.f32.mrb[0].mxu0
        %v552 = vadd.f32 0.0, %v551
        %v553 = vpop.f32.mrb[0].mxu0
        %554 = vdwg.mxu0
        %555 = vmatprep.subr.mxu0 0.0
        %556 = vmatpush1.msra.mxu0 %v389
        %557 = vmatprep.subr.mxu0 0.0
        %558 = vmatpush1.msra.mxu0 0.0
        %559 = vmatprep.subr.mxu0 0.0
        %560 = vmatpush1.msra.mxu0 0.0
        %561 = vmatprep.subr.mxu0 0.0
        %562 = vmatpush1.msra.mxu0 0.0
        %563 = vmatprep.subr.mxu0 0.0
        %564 = vmatpush1.msra.mxu0 0.0
        %565 = vmatprep.subr.mxu0 0.0
        %566 = vmatpush1.msra.mxu0 0.0
        %567 = vmatprep.subr.mxu0 0.0
        %568 = vmatpush1.msra.mxu0 0.0
        %569 = vmatprep.subr.mxu0 0.0
        %570 = vmatpush1.msra.mxu0 0.0
        %571 = vmatprep.subr.mxu0 0.0
        %572 = vmatpush1.msra.mxu0 0.0
        %573 = vmatprep.subr.mxu0 0.0
        %574 = vmatpush1.msra.mxu0 0.0
        %575 = vmatprep.subr.mxu0 0.0
        %576 = vmatpush1.msra.mxu0 0.0
        %577 = vmatprep.subr.mxu0 0.0
        %578 = vmatpush1.msra.mxu0 0.0
        %579 = vmatprep.subr.mxu0 0.0
        %580 = vmatpush1.msra.mxu0 0.0
        %581 = vmatprep.subr.mxu0 0.0
        %582 = vmatpush1.msra.mxu0 0.0
        %583 = vmatprep.subr.mxu0 0.0
        %584 = vmatpush1.msra.mxu0 0.0
        %585 = vmatprep.subr.mxu0 0.0
        %586 = vmatpush1.msra.mxu0 0.0
        %587 = vmatprep.subr.mxu0 0.0
        %588 = vmatpush1.msra.mxu0 0.0
        %589 = vmatprep.subr.mxu0 0.0
        %590 = vmatpush1.msra.mxu0 0.0
        %591 = vmatprep.subr.mxu0 0.0
        %592 = vmatpush1.msra.mxu0 0.0
        %593 = vmatprep.subr.mxu0 0.0
        %594 = vmatpush1.msra.mxu0 0.0
        %595 = vmatprep.subr.mxu0 0.0
        %596 = vmatpush1.msra.mxu0 0.0
        %597 = vmatprep.subr.mxu0 0.0
        %598 = vmatpush1.msra.mxu0 0.0
        %599 = vmatprep.subr.mxu0 0.0
        %600 = vmatpush1.msra.mxu0 0.0
        %601 = vmatprep.subr.mxu0 0.0
        %602 = vmatpush1.msra.mxu0 0.0
        %603 = vmatprep.subr.mxu0 0.0
        %604 = vmatpush1.msra.mxu0 0.0
        %605 = vmatprep.subr.mxu0 0.0
        %606 = vmatpush1.msra.mxu0 0.0
        %607 = vmatprep.subr.mxu0 0.0
        %608 = vmatpush1.msra.mxu0 0.0
        %609 = vmatprep.subr.mxu0 0.0
        %610 = vmatpush1.msra.mxu0 0.0
        %611 = vmatprep.subr.mxu0 0.0
        %612 = vmatpush1.msra.mxu0 0.0
        %613 = vmatprep.subr.mxu0 0.0
        %614 = vmatpush1.msra.mxu0 0.0
        %615 = vmatprep.subr.mxu0 0.0
        %616 = vmatpush1.msra.mxu0 0.0
        %617 = vmatprep.subr.mxu0 0.0
        %618 = vmatpush1.msra.mxu0 0.0
        %619 = vmatprep.mubr.f32.mxu0 0.0
        %620 = vmatmul.mubr.f32.gmra.mrb[0].mxu0 %v400
        %v621 = vpop.f32.mrb[0].mxu0
        %v622 = vadd.f32 0.0, %v621
        %v623 = vpop.f32.mrb[0].mxu0
        %624 = vmatprep.mubr.f32.mxu0 0.0
        %625 = vmatmul.mubr.f32.gmra.mrb[0].mxu0 %v403
        %v626 = vpop.f32.mrb[0].mxu0
        %v627 = vadd.f32 0.0, %v626
        %v628 = vpop.f32.mrb[0].mxu0
        %629 = vdwg.mxu0
        %630 = vmatprep.subr.mxu0 0.0
        %631 = vmatpush1.msra.mxu0 %v390
        %632 = vmatprep.subr.mxu0 0.0
        %633 = vmatpush1.msra.mxu0 0.0
        %634 = vmatprep.subr.mxu0 0.0
        %635 = vmatpush1.msra.mxu0 0.0
        %636 = vmatprep.subr.mxu0 0.0
        %637 = vmatpush1.msra.mxu0 0.0
        %638 = vmatprep.subr.mxu0 0.0
        %639 = vmatpush1.msra.mxu0 0.0
        %640 = vmatprep.subr.mxu0 0.0
        %641 = vmatpush1.msra.mxu0 0.0
        %642 = vmatprep.subr.mxu0 0.0
        %643 = vmatpush1.msra.mxu0 0.0
        %644 = vmatprep.subr.mxu0 0.0
        %645 = vmatpush1.msra.mxu0 0.0
        %646 = vmatprep.subr.mxu0 0.0
        %647 = vmatpush1.msra.mxu0 0.0
        %648 = vmatprep.subr.mxu0 0.0
        %649 = vmatpush1.msra.mxu0 0.0
        %650 = vmatprep.subr.mxu0 0.0
        %651 = vmatpush1.msra.mxu0 0.0
        %652 = vmatprep.subr.mxu0 0.0
        %653 = vmatpush1.msra.mxu0 0.0
        %654 = vmatprep.subr.mxu0 0.0
        %655 = vmatpush1.msra.mxu0 0.0
        %656 = vmatprep.subr.mxu0 0.0
        %657 = vmatpush1.msra.mxu0 0.0
        %658 = vmatprep.subr.mxu0 0.0
        %659 = vmatpush1.msra.mxu0 0.0
        %660 = vmatprep.subr.mxu0 0.0
        %661 = vmatpush1.msra.mxu0 0.0
        %662 = vmatprep.subr.mxu0 0.0
        %663 = vmatpush1.msra.mxu0 0.0
        %664 = vmatprep.subr.mxu0 0.0
        %665 = vmatpush1.msra.mxu0 0.0
        %666 = vmatprep.subr.mxu0 0.0
        %667 = vmatpush1.msra.mxu0 0.0
        %668 = vmatprep.subr.mxu0 0.0
        %669 = vmatpush1.msra.mxu0 0.0
        %670 = vmatprep.subr.mxu0 0.0
        %671 = vmatpush1.msra.mxu0 0.0
        %672 = vmatprep.subr.mxu0 0.0
        %673 = vmatpush1.msra.mxu0 0.0
        %674 = vmatprep.subr.mxu0 0.0
        %675 = vmatpush1.msra.mxu0 0.0
        %676 = vmatprep.subr.mxu0 0.0
        %677 = vmatpush1.msra.mxu0 0.0
        %678 = vmatprep.subr.mxu0 0.0
        %679 = vmatpush1.msra.mxu0 0.0
        %680 = vmatprep.subr.mxu0 0.0
        %681 = vmatpush1.msra.mxu0 0.0
        %682 = vmatprep.subr.mxu0 0.0
        %683 = vmatpush1.msra.mxu0 0.0
        %684 = vmatprep.subr.mxu0 0.0
        %685 = vmatpush1.msra.mxu0 0.0
        %686 = vmatprep.subr.mxu0 0.0
        %687 = vmatpush1.msra.mxu0 0.0
        %688 = vmatprep.subr.mxu0 0.0
        %689 = vmatpush1.msra.mxu0 0.0
        %690 = vmatprep.subr.mxu0 0.0
        %691 = vmatpush1.msra.mxu0 0.0
        %692 = vmatprep.subr.mxu0 0.0
        %693 = vmatpush1.msra.mxu0 0.0
        %694 = vmatprep.mubr.f32.mxu0 0.0
        %695 = vmatmul.mubr.f32.gmra.mrb[0].mxu0 %v400
        %v696 = vpop.f32.mrb[0].mxu0
        %v697 = vadd.f32 0.0, %v696
        %v698 = vpop.f32.mrb[0].mxu0
        %699 = vmatprep.mubr.f32.mxu0 0.0
        %700 = vmatmul.mubr.f32.gmra.mrb[0].mxu0 %v403
        %v701 = vpop.f32.mrb[0].mxu0
        %v702 = vadd.f32 0.0, %v701
        %v703 = vpop.f32.mrb[0].mxu0
        %704 = vdwg.mxu0
        %705 = vmatprep.subr.mxu0 0.0
        %706 = vmatpush1.msra.mxu0 %v391
        %707 = vmatprep.subr.mxu0 0.0
        %708 = vmatpush1.msra.mxu0 0.0
        %709 = vmatprep.subr.mxu0 0.0
        %710 = vmatpush1.msra.mxu0 0.0
        %711 = vmatprep.subr.mxu0 0.0
        %712 = vmatpush1.msra.mxu0 0.0
        %713 = vmatprep.subr.mxu0 0.0
        %714 = vmatpush1.msra.mxu0 0.0
        %715 = vmatprep.subr.mxu0 0.0
        %716 = vmatpush1.msra.mxu0 0.0
        %717 = vmatprep.subr.mxu0 0.0
        %718 = vmatpush1.msra.mxu0 0.0
        %719 = vmatprep.subr.mxu0 0.0
        %720 = vmatpush1.msra.mxu0 0.0
        %721 = vmatprep.subr.mxu0 0.0
        %722 = vmatpush1.msra.mxu0 0.0
        %723 = vmatprep.subr.mxu0 0.0
        %724 = vmatpush1.msra.mxu0 0.0
        %725 = vmatprep.subr.mxu0 0.0
        %726 = vmatpush1.msra.mxu0 0.0
        %727 = vmatprep.subr.mxu0 0.0
        %728 = vmatpush1.msra.mxu0 0.0
        %729 = vmatprep.subr.mxu0 0.0
        %730 = vmatpush1.msra.mxu0 0.0
        %731 = vmatprep.subr.mxu0 0.0
        %732 = vmatpush1.msra.mxu0 0.0
        %733 = vmatprep.subr.mxu0 0.0
        %734 = vmatpush1.msra.mxu0 0.0
        %735 = vmatprep.subr.mxu0 0.0
        %736 = vmatpush1.msra.mxu0 0.0
        %737 = vmatprep.subr.mxu0 0.0
        %738 = vmatpush1.msra.mxu0 0.0
        %739 = vmatprep.subr.mxu0 0.0
        %740 = vmatpush1.msra.mxu0 0.0
        %741 = vmatprep.subr.mxu0 0.0
        %742 = vmatpush1.msra.mxu0 0.0
        %743 = vmatprep.subr.mxu0 0.0
        %744 = vmatpush1.msra.mxu0 0.0
        %745 = vmatprep.subr.mxu0 0.0
        %746 = vmatpush1.msra.mxu0 0.0
        %747 = vmatprep.subr.mxu0 0.0
        %748 = vmatpush1.msra.mxu0 0.0
        %749 = vmatprep.subr.mxu0 0.0
        %750 = vmatpush1.msra.mxu0 0.0
        %751 = vmatprep.subr.mxu0 0.0
        %752 = vmatpush1.msra.mxu0 0.0
        %753 = vmatprep.subr.mxu0 0.0
        %754 = vmatpush1.msra.mxu0 0.0
        %755 = vmatprep.subr.mxu0 0.0
        %756 = vmatpush1.msra.mxu0 0.0
        %757 = vmatprep.subr.mxu0 0.0
        %758 = vmatpush1.msra.mxu0 0.0
        %759 = vmatprep.subr.mxu0 0.0
        %760 = vmatpush1.msra.mxu0 0.0
        %761 = vmatprep.subr.mxu0 0.0
        %762 = vmatpush1.msra.mxu0 0.0
        %763 = vmatprep.subr.mxu0 0.0
        %764 = vmatpush1.msra.mxu0 0.0
        %765 = vmatprep.subr.mxu0 0.0
        %766 = vmatpush1.msra.mxu0 0.0
        %767 = vmatprep.subr.mxu0 0.0
        %768 = vmatpush1.msra.mxu0 0.0
        %769 = vmatprep.mubr.f32.mxu0 0.0
        %770 = vmatmul.mubr.f32.gmra.mrb[0].mxu0 %v400
        %v771 = vpop.f32.mrb[0].mxu0
        %v772 = vadd.f32 0.0, %v771
        %v773 = vpop.f32.mrb[0].mxu0
        %774 = vmatprep.mubr.f32.mxu0 0.0
        %775 = vmatmul.mubr.f32.gmra.mrb[0].mxu0 %v403
        %v776 = vpop.f32.mrb[0].mxu0
        %v777 = vadd.f32 0.0, %v776
        %v778 = vpop.f32.mrb[0].mxu0
        %779 = vdwg.mxu0
        %780 = vmatprep.subr.mxu0 0.0
        %781 = vmatpush1.msra.mxu0 %v392
        %782 = vmatprep.subr.mxu0 0.0
        %783 = vmatpush1.msra.mxu0 0.0
        %784 = vmatprep.subr.mxu0 0.0
        %785 = vmatpush1.msra.mxu0 0.0
        %786 = vmatprep.subr.mxu0 0.0
        %787 = vmatpush1.msra.mxu0 0.0
        %788 = vmatprep.subr.mxu0 0.0
        %789 = vmatpush1.msra.mxu0 0.0
        %790 = vmatprep.subr.mxu0 0.0
        %791 = vmatpush1.msra.mxu0 0.0
        %792 = vmatprep.subr.mxu0 0.0
        %793 = vmatpush1.msra.mxu0 0.0
        %794 = vmatprep.subr.mxu0 0.0
        %795 = vmatpush1.msra.mxu0 0.0
        %796 = vmatprep.subr.mxu0 0.0
        %797 = vmatpush1.msra.mxu0 0.0
        %798 = vmatprep.subr.mxu0 0.0
        %799 = vmatpush1.msra.mxu0 0.0
        %800 = vmatprep.subr.mxu0 0.0
        %801 = vmatpush1.msra.mxu0 0.0
        %802 = vmatprep.subr.mxu0 0.0
        %803 = vmatpush1.msra.mxu0 0.0
        %804 = vmatprep.subr.mxu0 0.0
        %805 = vmatpush1.msra.mxu0 0.0
        %806 = vmatprep.subr.mxu0 0.0
        %807 = vmatpush1.msra.mxu0 0.0
        %808 = vmatprep.subr.mxu0 0.0
        %809 = vmatpush1.msra.mxu0 0.0
        %810 = vmatprep.subr.mxu0 0.0
        %811 = vmatpush1.msra.mxu0 0.0
        %812 = vmatprep.subr.mxu0 0.0
        %813 = vmatpush1.msra.mxu0 0.0
        %814 = vmatprep.subr.mxu0 0.0
        %815 = vmatpush1.msra.mxu0 0.0
        %816 = vmatprep.subr.mxu0 0.0
        %817 = vmatpush1.msra.mxu0 0.0
        %818 = vmatprep.subr.mxu0 0.0
        %819 = vmatpush1.msra.mxu0 0.0
        %820 = vmatprep.subr.mxu0 0.0
        %821 = vmatpush1.msra.mxu0 0.0
        %822 = vmatprep.subr.mxu0 0.0
        %823 = vmatpush1.msra.mxu0 0.0
        %824 = vmatprep.subr.mxu0 0.0
        %825 = vmatpush1.msra.mxu0 0.0
        %826 = vmatprep.subr.mxu0 0.0
        %827 = vmatpush1.msra.mxu0 0.0
        %828 = vmatprep.subr.mxu0 0.0
        %829 = vmatpush1.msra.mxu0 0.0
        %830 = vmatprep.subr.mxu0 0.0
        %831 = vmatpush1.msra.mxu0 0.0
        %832 = vmatprep.subr.mxu0 0.0
        %833 = vmatpush1.msra.mxu0 0.0
        %834 = vmatprep.subr.mxu0 0.0
        %835 = vmatpush1.msra.mxu0 0.0
        %836 = vmatprep.subr.mxu0 0.0
        %837 = vmatpush1.msra.mxu0 0.0
        %838 = vmatprep.subr.mxu0 0.0
        %839 = vmatpush1.msra.mxu0 0.0
        %840 = vmatprep.subr.mxu0 0.0
        %841 = vmatpush1.msra.mxu0 0.0
        %842 = vmatprep.subr.mxu0 0.0
        %843 = vmatpush1.msra.mxu0 0.0
        %844 = vmatprep.mubr.f32.mxu0 0.0
        %845 = vmatmul.mubr.f32.gmra.mrb[0].mxu0 %v400
        %v846 = vpop.f32.mrb[0].mxu0
        %v847 = vadd.f32 0.0, %v846
        %v848 = vpop.f32.mrb[0].mxu0
        %849 = vmatprep.mubr.f32.mxu0 0.0
        %850 = vmatmul.mubr.f32.gmra.mrb[0].mxu0 %v403
        %v851 = vpop.f32.mrb[0].mxu0
        %v852 = vadd.f32 0.0, %v851
        %v853 = vpop.f32.mrb[0].mxu0
        %854 = vdwg.mxu0
        %855 = vmatprep.subr.mxu0 0.0
        %856 = vmatpush1.msra.mxu0 %v393
        %857 = vmatprep.subr.mxu0 0.0
        %858 = vmatpush1.msra.mxu0 0.0
        %859 = vmatprep.subr.mxu0 0.0
        %860 = vmatpush1.msra.mxu0 0.0
        %861 = vmatprep.subr.mxu0 0.0
        %862 = vmatpush1.msra.mxu0 0.0
        %863 = vmatprep.subr.mxu0 0.0
        %864 = vmatpush1.msra.mxu0 0.0
        %865 = vmatprep.subr.mxu0 0.0
        %866 = vmatpush1.msra.mxu0 0.0
        %867 = vmatprep.subr.mxu0 0.0
        %868 = vmatpush1.msra.mxu0 0.0
        %869 = vmatprep.subr.mxu0 0.0
        %870 = vmatpush1.msra.mxu0 0.0
        %871 = vmatprep.subr.mxu0 0.0
        %872 = vmatpush1.msra.mxu0 0.0
        %873 = vmatprep.subr.mxu0 0.0
        %874 = vmatpush1.msra.mxu0 0.0
        %875 = vmatprep.subr.mxu0 0.0
        %876 = vmatpush1.msra.mxu0 0.0
        %877 = vmatprep.subr.mxu0 0.0
        %878 = vmatpush1.msra.mxu0 0.0
        %879 = vmatprep.subr.mxu0 0.0
        %880 = vmatpush1.msra.mxu0 0.0
        %881 = vmatprep.subr.mxu0 0.0
        %882 = vmatpush1.msra.mxu0 0.0
        %883 = vmatprep.subr.mxu0 0.0
        %884 = vmatpush1.msra.mxu0 0.0
        %885 = vmatprep.subr.mxu0 0.0
        %886 = vmatpush1.msra.mxu0 0.0
        %887 = vmatprep.subr.mxu0 0.0
        %888 = vmatpush1.msra.mxu0 0.0
        %889 = vmatprep.subr.mxu0 0.0
        %890 = vmatpush1.msra.mxu0 0.0
        %891 = vmatprep.subr.mxu0 0.0
        %892 = vmatpush1.msra.mxu0 0.0
        %893 = vmatprep.subr.mxu0 0.0
        %894 = vmatpush1.msra.mxu0 0.0
        %895 = vmatprep.subr.mxu0 0.0
        %896 = vmatpush1.msra.mxu0 0.0
        %897 = vmatprep.subr.mxu0 0.0
        %898 = vmatpush1.msra.mxu0 0.0
        %899 = vmatprep.subr.mxu0 0.0
        %900 = vmatpush1.msra.mxu0 0.0
        %901 = vmatprep.subr.mxu0 0.0
        %902 = vmatpush1.msra.mxu0 0.0
        %903 = vmatprep.subr.mxu0 0.0
        %904 = vmatpush1.msra.mxu0 0.0
        %905 = vmatprep.subr.mxu0 0.0
        %906 = vmatpush1.msra.mxu0 0.0
        %907 = vmatprep.subr.mxu0 0.0
        %908 = vmatpush1.msra.mxu0 0.0
        %909 = vmatprep.subr.mxu0 0.0
        %910 = vmatpush1.msra.mxu0 0.0
        %911 = vmatprep.subr.mxu0 0.0
        %912 = vmatpush1.msra.mxu0 0.0
        %913 = vmatprep.subr.mxu0 0.0
        %914 = vmatpush1.msra.mxu0 0.0
        %915 = vmatprep.subr.mxu0 0.0
        %916 = vmatpush1.msra.mxu0 0.0
        %917 = vmatprep.subr.mxu0 0.0
        %918 = vmatpush1.msra.mxu0 0.0
        %919 = vmatprep.mubr.f32.mxu0 0.0
        %920 = vmatmul.mubr.f32.gmra.mrb[0].mxu0 %v400
        %v921 = vpop.f32.mrb[0].mxu0
        %v922 = vadd.f32 0.0, %v921
        %v923 = vpop.f32.mrb[0].mxu0
        %924 = vmatprep.mubr.f32.mxu0 0.0
        %925 = vmatmul.mubr.f32.gmra.mrb[0].mxu0 %v403
        %v926 = vpop.f32.mrb[0].mxu0
        %v927 = vadd.f32 0.0, %v926
        %v928 = vpop.f32.mrb[0].mxu0
        %929 = vdwg.mxu0
        %930 = vmatprep.subr.mxu0 0.0
        %931 = vmatpush1.msra.mxu0 %v394
        %932 = vmatprep.subr.mxu0 0.0
        %933 = vmatpush1.msra.mxu0 0.0
        %934 = vmatprep.subr.mxu0 0.0
        %935 = vmatpush1.msra.mxu0 0.0
        %936 = vmatprep.subr.mxu0 0.0
        %937 = vmatpush1.msra.mxu0 0.0
        %938 = vmatprep.subr.mxu0 0.0
        %939 = vmatpush1.msra.mxu0 0.0
        %940 = vmatprep.subr.mxu0 0.0
        %941 = vmatpush1.msra.mxu0 0.0
        %942 = vmatprep.subr.mxu0 0.0
        %943 = vmatpush1.msra.mxu0 0.0
        %944 = vmatprep.subr.mxu0 0.0
        %945 = vmatpush1.msra.mxu0 0.0
        %946 = vmatprep.subr.mxu0 0.0
        %947 = vmatpush1.msra.mxu0 0.0
        %948 = vmatprep.subr.mxu0 0.0
        %949 = vmatpush1.msra.mxu0 0.0
        %950 = vmatprep.subr.mxu0 0.0
        %951 = vmatpush1.msra.mxu0 0.0
        %952 = vmatprep.subr.mxu0 0.0
        %953 = vmatpush1.msra.mxu0 0.0
        %954 = vmatprep.subr.mxu0 0.0
        %955 = vmatpush1.msra.mxu0 0.0
        %956 = vmatprep.subr.mxu0 0.0
        %957 = vmatpush1.msra.mxu0 0.0
        %958 = vmatprep.subr.mxu0 0.0
        %959 = vmatpush1.msra.mxu0 0.0
        %960 = vmatprep.subr.mxu0 0.0
        %961 = vmatpush1.msra.mxu0 0.0
        %962 = vmatprep.subr.mxu0 0.0
        %963 = vmatpush1.msra.mxu0 0.0
        %964 = vmatprep.subr.mxu0 0.0
        %965 = vmatpush1.msra.mxu0 0.0
        %966 = vmatprep.subr.mxu0 0.0
        %967 = vmatpush1.msra.mxu0 0.0
        %968 = vmatprep.subr.mxu0 0.0
        %969 = vmatpush1.msra.mxu0 0.0
        %970 = vmatprep.subr.mxu0 0.0
        %971 = vmatpush1.msra.mxu0 0.0
        %972 = vmatprep.subr.mxu0 0.0
        %973 = vmatpush1.msra.mxu0 0.0
        %974 = vmatprep.subr.mxu0 0.0
        %975 = vmatpush1.msra.mxu0 0.0
        %976 = vmatprep.subr.mxu0 0.0
        %977 = vmatpush1.msra.mxu0 0.0
        %978 = vmatprep.subr.mxu0 0.0
        %979 = vmatpush1.msra.mxu0 0.0
        %980 = vmatprep.subr.mxu0 0.0
        %981 = vmatpush1.msra.mxu0 0.0
        %982 = vmatprep.subr.mxu0 0.0
        %983 = vmatpush1.msra.mxu0 0.0
        %984 = vmatprep.subr.mxu0 0.0
        %985 = vmatpush1.msra.mxu0 0.0
        %986 = vmatprep.subr.mxu0 0.0
        %987 = vmatpush1.msra.mxu0 0.0
        %988 = vmatprep.subr.mxu0 0.0
        %989 = vmatpush1.msra.mxu0 0.0
        %990 = vmatprep.subr.mxu0 0.0
        %991 = vmatpush1.msra.mxu0 0.0
        %992 = vmatprep.subr.mxu0 0.0
        %993 = vmatpush1.msra.mxu0 0.0
        %994 = vmatprep.mubr.f32.mxu0 0.0
        %995 = vmatmul.mubr.f32.gmra.mrb[0].mxu0 %v400
        %v996 = vpop.f32.mrb[0].mxu0
        %v997 = vadd.f32 0.0, %v996
        %v998 = vpop.f32.mrb[0].mxu0
        %999 = vmatprep.mubr.f32.mxu0 0.0
        %1000 = vmatmul.mubr.f32.gmra.mrb[0].mxu0 %v403
        %v1001 = vpop.f32.mrb[0].mxu0
        %v1002 = vadd.f32 0.0, %v1001
        %v1003 = vpop.f32.mrb[0].mxu0
        %1004 = vdwg.mxu0
        %v1006 = vsel %vm398, %v472, 0
        %v1009 = vsel %vm398, %v477, 0
        %v1012 = vsel %vm398, %v547, 0
        %v1015 = vsel %vm398, %v552, 0
        %v1018 = vsel %vm398, %v622, 0
        %v1021 = vsel %vm398, %v627, 0
        %v1024 = vsel %vm398, %v697, 0
        %v1027 = vsel %vm398, %v702, 0
        %v1030 = vsel %vm398, %v772, 0
        %v1033 = vsel %vm398, %v777, 0
        %v1036 = vsel %vm398, %v847, 0
        %v1039 = vsel %vm398, %v852, 0
        %v1042 = vsel %vm398, %v922, 0
        %v1045 = vsel %vm398, %v927, 0
        %v1048 = vsel %vm398, %v997, 0
        %v1051 = vsel %vm398, %v1002, 0
        %1053 = vmatprep.subr.mxu0 0.0
        %1054 = vmatpush1.msra.mxu0 %v397
        %1055 = vmatprep.subr.mxu0 0.0
        %1056 = vmatpush1.msra.mxu0 0.0
        %1057 = vmatprep.subr.mxu0 0.0
        %1058 = vmatpush1.msra.mxu0 0.0
        %1059 = vmatprep.subr.mxu0 0.0
        %1060 = vmatpush1.msra.mxu0 0.0
        %1061 = vmatprep.subr.mxu0 0.0
        %1062 = vmatpush1.msra.mxu0 0.0
        %1063 = vmatprep.subr.mxu0 0.0
        %1064 = vmatpush1.msra.mxu0 0.0
        %1065 = vmatprep.subr.mxu0 0.0
        %1066 = vmatpush1.msra.mxu0 0.0
        %1067 = vmatprep.subr.mxu0 0.0
        %1068 = vmatpush1.msra.mxu0 0.0
        %1069 = vmatprep.subr.mxu0 0.0
        %1070 = vmatpush1.msra.mxu0 0.0
        %1071 = vmatprep.subr.mxu0 0.0
        %1072 = vmatpush1.msra.mxu0 0.0
        %1073 = vmatprep.subr.mxu0 0.0
        %1074 = vmatpush1.msra.mxu0 0.0
        %1075 = vmatprep.subr.mxu0 0.0
        %1076 = vmatpush1.msra.mxu0 0.0
        %1077 = vmatprep.subr.mxu0 0.0
        %1078 = vmatpush1.msra.mxu0 0.0
        %1079 = vmatprep.subr.mxu0 0.0
        %1080 = vmatpush1.msra.mxu0 0.0
        %1081 = vmatprep.subr.mxu0 0.0
        %1082 = vmatpush1.msra.mxu0 0.0
        %1083 = vmatprep.subr.mxu0 0.0
        %1084 = vmatpush1.msra.mxu0 0.0
        %1085 = vmatprep.subr.mxu0 0.0
        %1086 = vmatpush1.msra.mxu0 0.0
        %1087 = vmatprep.subr.mxu0 0.0
        %1088 = vmatpush1.msra.mxu0 0.0
        %1089 = vmatprep.subr.mxu0 0.0
        %1090 = vmatpush1.msra.mxu0 0.0
        %1091 = vmatprep.subr.mxu0 0.0
        %1092 = vmatpush1.msra.mxu0 0.0
        %1093 = vmatprep.subr.mxu0 0.0
        %1094 = vmatpush1.msra.mxu0 0.0
        %1095 = vmatprep.subr.mxu0 0.0
        %1096 = vmatpush1.msra.mxu0 0.0
        %1097 = vmatprep.subr.mxu0 0.0
        %1098 = vmatpush1.msra.mxu0 0.0
        %1099 = vmatprep.subr.mxu0 0.0
        %1100 = vmatpush1.msra.mxu0 0.0
        %1101 = vmatprep.subr.mxu0 0.0
        %1102 = vmatpush1.msra.mxu0 0.0
        %1103 = vmatprep.subr.mxu0 0.0
        %1104 = vmatpush1.msra.mxu0 0.0
        %1105 = vmatprep.subr.mxu0 0.0
        %1106 = vmatpush1.msra.mxu0 0.0
        %1107 = vmatprep.subr.mxu0 0.0
        %1108 = vmatpush1.msra.mxu0 0.0
        %1109 = vmatprep.subr.mxu0 0.0
        %1110 = vmatpush1.msra.mxu0 0.0
        %1111 = vmatprep.subr.mxu0 0.0
        %1112 = vmatpush1.msra.mxu0 0.0
        %1113 = vmatprep.subr.mxu0 0.0
        %1114 = vmatpush1.msra.mxu0 0.0
        %1115 = vmatprep.subr.mxu0 0.0
        %1116 = vmatpush1.msra.mxu0 0.0
        %1117 = vmatprep.mubr.f32.mxu0 0.0
        %1118 = vmatmul.mubr.f32.gmra.mrb[0].mxu0 %v1006
        %v1119 = vpop.f32.mrb[0].mxu0
        %v1120 = vadd.f32 0.0, %v1119
        %v1121 = vpop.f32.mrb[0].mxu0
        %1122 = vmatprep.mubr.f32.mxu0 0.0
        %1123 = vmatmul.mubr.f32.gmra.mrb[0].mxu0 %v1009
        %v1124 = vpop.f32.mrb[0].mxu0
        %v1125 = vadd.f32 0.0, %v1124
        %v1126 = vpop.f32.mrb[0].mxu0
        %1127 = vmatprep.mubr.f32.mxu0 0.0
        %1128 = vmatmul.mubr.f32.gmra.mrb[0].mxu0 %v1012
        %v1129 = vpop.f32.mrb[0].mxu0
        %v1130 = vadd.f32 0.0, %v1129
        %v1131 = vpop.f32.mrb[0].mxu0
        %1132 = vmatprep.mubr.f32.mxu0 0.0
        %1133 = vmatmul.mubr.f32.gmra.mrb[0].mxu0 %v1015
        %v1134 = vpop.f32.mrb[0].mxu0
        %v1135 = vadd.f32 0.0, %v1134
        %v1136 = vpop.f32.mrb[0].mxu0
        %1137 = vmatprep.mubr.f32.mxu0 0.0
        %1138 = vmatmul.mubr.f32.gmra.mrb[0].mxu0 %v1018
        %v1139 = vpop.f32.mrb[0].mxu0
        %v1140 = vadd.f32 0.0, %v1139
        %v1141 = vpop.f32.mrb[0].mxu0
        %1142 = vmatprep.mubr.f32.mxu0 0.0
        %1143 = vmatmul.mubr.f32.gmra.mrb[0].mxu0 %v1021
        %v1144 = vpop.f32.mrb[0].mxu0
        %v1145 = vadd.f32 0.0, %v1144
        %v1146 = vpop.f32.mrb[0].mxu0
        %1147 = vmatprep.mubr.f32.mxu0 0.0
        %1148 = vmatmul.mubr.f32.gmra.mrb[0].mxu0 %v1024
        %v1149 = vpop.f32.mrb[0].mxu0
        %v1150 = vadd.f32 0.0, %v1149
        %v1151 = vpop.f32.mrb[0].mxu0
        %1152 = vmatprep.mubr.f32.mxu0 0.0
        %1153 = vmatmul.mubr.f32.gmra.mrb[0].mxu0 %v1027
        %v1154 = vpop.f32.mrb[0].mxu0
        %v1155 = vadd.f32 0.0, %v1154
        %v1156 = vpop.f32.mrb[0].mxu0
        %1157 = vmatprep.mubr.f32.mxu0 0.0
        %1158 = vmatmul.mubr.f32.gmra.mrb[0].mxu0 %v1030
        %v1159 = vpop.f32.mrb[0].mxu0
        %v1160 = vadd.f32 0.0, %v1159
        %v1161 = vpop.f32.mrb[0].mxu0
        %1162 = vmatprep.mubr.f32.mxu0 0.0
        %1163 = vmatmul.mubr.f32.gmra.mrb[0].mxu0 %v1033
        %v1164 = vpop.f32.mrb[0].mxu0
        %v1165 = vadd.f32 0.0, %v1164
        %v1166 = vpop.f32.mrb[0].mxu0
        %1167 = vmatprep.mubr.f32.mxu0 0.0
        %1168 = vmatmul.mubr.f32.gmra.mrb[0].mxu0 %v1036
        %v1169 = vpop.f32.mrb[0].mxu0
        %v1170 = vadd.f32 0.0, %v1169
        %v1171 = vpop.f32.mrb[0].mxu0
        %1172 = vmatprep.mubr.f32.mxu0 0.0
        %1173 = vmatmul.mubr.f32.gmra.mrb[0].mxu0 %v1039
        %v1174 = vpop.f32.mrb[0].mxu0
        %v1175 = vadd.f32 0.0, %v1174
        %v1176 = vpop.f32.mrb[0].mxu0
        %1177 = vmatprep.mubr.f32.mxu0 0.0
        %1178 = vmatmul.mubr.f32.gmra.mrb[0].mxu0 %v1042
        %v1179 = vpop.f32.mrb[0].mxu0
        %v1180 = vadd.f32 0.0, %v1179
        %v1181 = vpop.f32.mrb[0].mxu0
        %1182 = vmatprep.mubr.f32.mxu0 0.0
        %1183 = vmatmul.mubr.f32.gmra.mrb[0].mxu0 %v1045
        %v1184 = vpop.f32.mrb[0].mxu0
        %v1185 = vadd.f32 0.0, %v1184
        %v1186 = vpop.f32.mrb[0].mxu0
        %1187 = vmatprep.mubr.f32.mxu0 0.0
        %1188 = vmatmul.mubr.f32.gmra.mrb[0].mxu0 %v1048
        %v1189 = vpop.f32.mrb[0].mxu0
        %v1190 = vadd.f32 0.0, %v1189
        %v1191 = vpop.f32.mrb[0].mxu0
        %1192 = vmatprep.mubr.f32.mxu0 0.0
        %1193 = vmatmul.mubr.f32.gmra.mrb[0].mxu0 %v1051
        %v1194 = vpop.f32.mrb[0].mxu0
        %v1195 = vadd.f32 0.0, %v1194
        %v1196 = vpop.f32.mrb[0].mxu0
        %1197 = vdwg.mxu0
        %v1198 = vld [vmem:[%s6] sm:$0xf]
        %v1201 = vunpack.c.l.s4 1966171168
        %v1202 = vunpack.c.0.s8 %v1201
        %v1203 = vlaneseq
        %v1204 = vshrl.u32 %v1203, 7
        %v1205 = vsub.s32 %v1202, %v1204
        %v1206 = vrot.slane %v1198, %v1205
        %v1207 = vcombine.high %v1206, %v1206
        %v1209 = vunpack.c.l.s4 1966171168
        %v1210 = vunpack.c.0.s8 %v1209
        %v1211 = vlaneseq
        %v1212 = vshrl.u32 %v1211, 7
        %v1213 = vsub.s32 %v1210, %v1212
        %v1214 = vrot.slane %v1206, %v1213
        %v1216 = vunpack.c.l.s4 1966171168
        %v1217 = vunpack.c.0.s8 %v1216
        %v1218 = vlaneseq
        %v1219 = vshrl.u32 %v1218, 7
        %v1220 = vsub.s32 %v1217, %v1219
        %v1221 = vrot.slane %v1207, %v1220
        %v1222 = vcombine.high %v1214, %v1214
        %v1223 = vcombine.high %v1221, %v1221
        %v1224 = vlaneseq
        %v1225 = vshrl.u32 %v1224, 7
        %v1226 = vsub.s32 0, %v1225
        %v1227 = vrot.slane %v1214, %v1226
        %v1228 = vlaneseq
        %v1229 = vshrl.u32 %v1228, 7
        %v1230 = vsub.s32 0, %v1229
        %v1231 = vrot.slane %v1221, %v1230
        %v1232 = vlaneseq
        %v1233 = vshrl.u32 %v1232, 7
        %v1234 = vsub.s32 0, %v1233
        %v1235 = vrot.slane %v1222, %v1234
        %v1236 = vlaneseq
        %v1237 = vshrl.u32 %v1236, 7
        %v1238 = vsub.s32 0, %v1237
        %v1239 = vrot.slane %v1223, %v1238
        %1240 = vset.pattern.permute.xlu0 0
        %1241 = vperm.xlu0 %1240, %v1227
        %v1242 = vpop.permute.xlu0 %1241
        %1244 = vset.pattern.permute.xlu0 0
        %1245 = vperm.xlu0 %1244, %v1231
        %v1246 = vpop.permute.xlu0 %1245
        %1248 = vset.pattern.permute.xlu0 0
        %1249 = vperm.xlu0 %1248, %v1235
        %v1250 = vpop.permute.xlu0 %1249
        %1252 = vset.pattern.permute.xlu0 0
        %1253 = vperm.xlu0 %1252, %v1239
        %v1254 = vpop.permute.xlu0 %1253
        %v1256 = vadd.f32 %v1160, %v1242
        %v1257 = vadd.f32 %v1165, %v1242
        %v1258 = vadd.f32 %v1170, %v1246
        %v1259 = vadd.f32 %v1175, %v1246
        %v1260 = vadd.f32 %v1180, %v1250
        %v1261 = vadd.f32 %v1185, %v1250
        %v1262 = vadd.f32 %v1190, %v1254
        %v1263 = vadd.f32 %v1195, %v1254
        %v1264 = vld [vmem:[%s4] sm:$0xf]
        %v1265 = vld [vmem:[%s5] sm:$0xf]
        %v1268 = vunpack.c.l.s4 1966171168
        %v1269 = vunpack.c.0.s8 %v1268
        %v1270 = vlaneseq
        %v1271 = vshrl.u32 %v1270, 7
        %v1272 = vsub.s32 %v1269, %v1271
        %v1273 = vrot.slane %v1265, %v1272
        %v1274 = vcombine.high %v1273, %v1273
        %v1276 = vunpack.c.l.s4 1966171168
        %v1277 = vunpack.c.0.s8 %v1276
        %v1278 = vlaneseq
        %v1279 = vshrl.u32 %v1278, 7
        %v1280 = vsub.s32 %v1277, %v1279
        %v1281 = vrot.slane %v1273, %v1280
        %v1283 = vunpack.c.l.s4 1966171168
        %v1284 = vunpack.c.0.s8 %v1283
        %v1285 = vlaneseq
        %v1286 = vshrl.u32 %v1285, 7
        %v1287 = vsub.s32 %v1284, %v1286
        %v1288 = vrot.slane %v1274, %v1287
        %v1289 = vcombine.high %v1281, %v1281
        %v1290 = vcombine.high %v1288, %v1288
        %v1291 = vlaneseq
        %v1292 = vshrl.u32 %v1291, 7
        %v1293 = vsub.s32 0, %v1292
        %v1294 = vrot.slane %v1281, %v1293
        %v1295 = vlaneseq
        %v1296 = vshrl.u32 %v1295, 7
        %v1297 = vsub.s32 0, %v1296
        %v1298 = vrot.slane %v1288, %v1297
        %v1299 = vlaneseq
        %v1300 = vshrl.u32 %v1299, 7
        %v1301 = vsub.s32 0, %v1300
        %v1302 = vrot.slane %v1289, %v1301
        %v1303 = vlaneseq
        %v1304 = vshrl.u32 %v1303, 7
        %v1305 = vsub.s32 0, %v1304
        %v1306 = vrot.slane %v1290, %v1305
        %1307 = vset.pattern.permute.xlu0 0
        %1308 = vperm.xlu0 %1307, %v1294
        %v1309 = vpop.permute.xlu0 %1308
        %1311 = vset.pattern.permute.xlu0 0
        %1312 = vperm.xlu0 %1311, %v1298
        %v1313 = vpop.permute.xlu0 %1312
        %1315 = vset.pattern.permute.xlu0 0
        %1316 = vperm.xlu0 %1315, %v1302
        %v1317 = vpop.permute.xlu0 %1316
        %1319 = vset.pattern.permute.xlu0 0
        %1320 = vperm.xlu0 %1319, %v1306
        %v1321 = vpop.permute.xlu0 %1320
        %v1323 = vadd.f32 %v1309, 0.0
        %v1324 = vadd.f32 %v1313, 0.0
        %v1325 = vadd.f32 %v1317, 0.0
        %v1326 = vadd.f32 %v1321, 0.0
        %v1329 = vunpack.c.l.s4 1966171168
        %v1330 = vunpack.c.0.s8 %v1329
        %v1331 = vlaneseq
        %v1332 = vshrl.u32 %v1331, 7
        %v1333 = vsub.s32 %v1330, %v1332
        %v1334 = vrot.slane %v1264, %v1333
        %v1335 = vcombine.high %v1334, %v1334
        %v1337 = vunpack.c.l.s4 1966171168
        %v1338 = vunpack.c.0.s8 %v1337
        %v1339 = vlaneseq
        %v1340 = vshrl.u32 %v1339, 7
        %v1341 = vsub.s32 %v1338, %v1340
        %v1342 = vrot.slane %v1334, %v1341
        %v1344 = vunpack.c.l.s4 1966171168
        %v1345 = vunpack.c.0.s8 %v1344
        %v1346 = vlaneseq
        %v1347 = vshrl.u32 %v1346, 7
        %v1348 = vsub.s32 %v1345, %v1347
        %v1349 = vrot.slane %v1335, %v1348
        %v1350 = vcombine.high %v1342, %v1342
        %v1351 = vcombine.high %v1349, %v1349
        %v1352 = vlaneseq
        %v1353 = vshrl.u32 %v1352, 7
        %v1354 = vsub.s32 0, %v1353
        %v1355 = vrot.slane %v1342, %v1354
        %v1356 = vlaneseq
        %v1357 = vshrl.u32 %v1356, 7
        %v1358 = vsub.s32 0, %v1357
        %v1359 = vrot.slane %v1349, %v1358
        %v1360 = vlaneseq
        %v1361 = vshrl.u32 %v1360, 7
        %v1362 = vsub.s32 0, %v1361
        %v1363 = vrot.slane %v1350, %v1362
        %v1364 = vlaneseq
        %v1365 = vshrl.u32 %v1364, 7
        %v1366 = vsub.s32 0, %v1365
        %v1367 = vrot.slane %v1351, %v1366
        %1368 = vset.pattern.permute.xlu0 0
        %1369 = vperm.xlu0 %1368, %v1355
        %v1370 = vpop.permute.xlu0 %1369
        %1372 = vset.pattern.permute.xlu0 0
        %1373 = vperm.xlu0 %1372, %v1359
        %v1374 = vpop.permute.xlu0 %1373
        %1376 = vset.pattern.permute.xlu0 0
        %1377 = vperm.xlu0 %1376, %v1363
        %v1378 = vpop.permute.xlu0 %1377
        %1380 = vset.pattern.permute.xlu0 0
        %1381 = vperm.xlu0 %1380, %v1367
        %v1382 = vpop.permute.xlu0 %1381
        %v1384 = vmul.f32 %v1370, %v379
        %v1385 = vmul.f32 %v1370, %v380
        %v1386 = vmul.f32 %v1374, %v379
        %v1387 = vmul.f32 %v1374, %v380
        %v1388 = vmul.f32 %v1378, %v379
        %v1389 = vmul.f32 %v1378, %v380
        %v1390 = vmul.f32 %v1382, %v379
        %v1391 = vmul.f32 %v1382, %v380
        %v1392 = vadd.f32 %v1323, %v1384
        %v1393 = vadd.f32 %v1323, %v1385
        %v1394 = vadd.f32 %v1324, %v1386
        %v1395 = vadd.f32 %v1324, %v1387
        %v1396 = vadd.f32 %v1325, %v1388
        %v1397 = vadd.f32 %v1325, %v1389
        %v1398 = vadd.f32 %v1326, %v1390
        %v1399 = vadd.f32 %v1326, %v1391
        %1400 = vset.pattern.permute.xlu0 1
        %1401 = vperm.xlu0 %1400, %v1355
        %v1402 = vpop.permute.xlu0 %1401
        %1404 = vset.pattern.permute.xlu0 1
        %1405 = vperm.xlu0 %1404, %v1359
        %v1406 = vpop.permute.xlu0 %1405
        %1408 = vset.pattern.permute.xlu0 1
        %1409 = vperm.xlu0 %1408, %v1363
        %v1410 = vpop.permute.xlu0 %1409
        %1412 = vset.pattern.permute.xlu0 1
        %1413 = vperm.xlu0 %1412, %v1367
        %v1414 = vpop.permute.xlu0 %1413
        %v1416 = vmul.f32 %v1402, %v381
        %v1417 = vmul.f32 %v1402, %v382
        %v1418 = vmul.f32 %v1406, %v381
        %v1419 = vmul.f32 %v1406, %v382
        %v1420 = vmul.f32 %v1410, %v381
        %v1421 = vmul.f32 %v1410, %v382
        %v1422 = vmul.f32 %v1414, %v381
        %v1423 = vmul.f32 %v1414, %v382
        %v1424 = vadd.f32 %v1392, %v1416
        %v1425 = vadd.f32 %v1393, %v1417
        %v1426 = vadd.f32 %v1394, %v1418
        %v1427 = vadd.f32 %v1395, %v1419
        %v1428 = vadd.f32 %v1396, %v1420
        %v1429 = vadd.f32 %v1397, %v1421
        %v1430 = vadd.f32 %v1398, %v1422
        %v1431 = vadd.f32 %v1399, %v1423
        %1432 = vset.pattern.permute.xlu0 2
        %1433 = vperm.xlu0 %1432, %v1355
        %v1434 = vpop.permute.xlu0 %1433
        %1436 = vset.pattern.permute.xlu0 2
        %1437 = vperm.xlu0 %1436, %v1359
        %v1438 = vpop.permute.xlu0 %1437
        %1440 = vset.pattern.permute.xlu0 2
        %1441 = vperm.xlu0 %1440, %v1363
        %v1442 = vpop.permute.xlu0 %1441
        %1444 = vset.pattern.permute.xlu0 2
        %1445 = vperm.xlu0 %1444, %v1367
        %v1446 = vpop.permute.xlu0 %1445
        %v1448 = vmul.f32 %v1434, %v383
        %v1449 = vmul.f32 %v1434, %v384
        %v1450 = vmul.f32 %v1438, %v383
        %v1451 = vmul.f32 %v1438, %v384
        %v1452 = vmul.f32 %v1442, %v383
        %v1453 = vmul.f32 %v1442, %v384
        %v1454 = vmul.f32 %v1446, %v383
        %v1455 = vmul.f32 %v1446, %v384
        %v1456 = vadd.f32 %v1424, %v1448
        %v1457 = vadd.f32 %v1425, %v1449
        %v1458 = vadd.f32 %v1426, %v1450
        %v1459 = vadd.f32 %v1427, %v1451
        %v1460 = vadd.f32 %v1428, %v1452
        %v1461 = vadd.f32 %v1429, %v1453
        %v1462 = vadd.f32 %v1430, %v1454
        %v1463 = vadd.f32 %v1431, %v1455
        %1464 = vset.pattern.permute.xlu0 3
        %1465 = vperm.xlu0 %1464, %v1355
        %v1466 = vpop.permute.xlu0 %1465
        %1468 = vset.pattern.permute.xlu0 3
        %1469 = vperm.xlu0 %1468, %v1359
        %v1470 = vpop.permute.xlu0 %1469
        %1472 = vset.pattern.permute.xlu0 3
        %1473 = vperm.xlu0 %1472, %v1363
        %v1474 = vpop.permute.xlu0 %1473
        %1476 = vset.pattern.permute.xlu0 3
        %1477 = vperm.xlu0 %1476, %v1367
        %v1478 = vpop.permute.xlu0 %1477
        %v1480 = vmul.f32 %v1466, %v385
        %v1481 = vmul.f32 %v1466, %v386
        %v1482 = vmul.f32 %v1470, %v385
        %v1483 = vmul.f32 %v1470, %v386
        %v1484 = vmul.f32 %v1474, %v385
        %v1485 = vmul.f32 %v1474, %v386
        %v1486 = vmul.f32 %v1478, %v385
        %v1487 = vmul.f32 %v1478, %v386
        %v1488 = vadd.f32 %v1456, %v1480
        %v1489 = vadd.f32 %v1457, %v1481
        %v1490 = vadd.f32 %v1458, %v1482
        %v1491 = vadd.f32 %v1459, %v1483
        %v1492 = vadd.f32 %v1460, %v1484
        %v1493 = vadd.f32 %v1461, %v1485
        %v1494 = vadd.f32 %v1462, %v1486
        %v1495 = vadd.f32 %v1463, %v1487
        %v1496 = vadd.f32 %v1488, %v1256
        %v1497 = vadd.f32 %v1489, %v1257
        %v1498 = vadd.f32 %v1490, %v1258
        %v1499 = vadd.f32 %v1491, %v1259
        %v1500 = vadd.f32 %v1492, %v1260
        %v1501 = vadd.f32 %v1493, %v1261
        %v1502 = vadd.f32 %v1494, %v1262
        %v1503 = vadd.f32 %v1495, %v1263
        %v1504 = vsub.f32 0.0, %v1496
        %v1505 = vsub.f32 0.0, %v1497
        %v1506 = vsub.f32 0.0, %v1498
        %v1507 = vsub.f32 0.0, %v1499
        %v1508 = vsub.f32 0.0, %v1500
        %v1509 = vsub.f32 0.0, %v1501
        %v1510 = vsub.f32 0.0, %v1502
        %v1511 = vsub.f32 0.0, %v1503
        %v1512 = vmul.f32 %v1504, 1.442695
        %v1513 = vpow.pop %v1512
        %v1514 = vmul.f32 %v1505, 1.442695
        %v1515 = vpow.pop %v1514
        %v1516 = vmul.f32 %v1506, 1.442695
        %v1517 = vpow.pop %v1516
        %v1518 = vmul.f32 %v1507, 1.442695
        %v1519 = vpow.pop %v1518
        %v1520 = vmul.f32 %v1508, 1.442695
        %v1521 = vpow.pop %v1520
        %v1522 = vmul.f32 %v1509, 1.442695
        %v1523 = vpow.pop %v1522
        %v1524 = vmul.f32 %v1510, 1.442695
        %v1525 = vpow.pop %v1524
        %v1526 = vmul.f32 %v1511, 1.442695
        %v1527 = vpow.pop %v1526
        %v1528 = vadd.f32 %v1513, 1.0
        %v1529 = vadd.f32 %v1515, 1.0
        %v1530 = vadd.f32 %v1517, 1.0
        %v1531 = vadd.f32 %v1519, 1.0
        %v1532 = vadd.f32 %v1521, 1.0
        %v1533 = vadd.f32 %v1523, 1.0
        %v1534 = vadd.f32 %v1525, 1.0
        %v1535 = vadd.f32 %v1527, 1.0
        %v1536 = vrcp.pop %v1528
        %v1537 = vmul.f32 1.0, %v1536
        %v1538 = vrcp.pop %v1529
        %v1539 = vmul.f32 1.0, %v1538
        %v1540 = vrcp.pop %v1530
        %v1541 = vmul.f32 1.0, %v1540
        %v1542 = vrcp.pop %v1531
        %v1543 = vmul.f32 1.0, %v1542
        %v1544 = vrcp.pop %v1532
        %v1545 = vmul.f32 1.0, %v1544
        %v1546 = vrcp.pop %v1533
        %v1547 = vmul.f32 1.0, %v1546
        %v1548 = vrcp.pop %v1534
        %v1549 = vmul.f32 1.0, %v1548
        %v1550 = vrcp.pop %v1535
        %v1551 = vmul.f32 1.0, %v1550
        %v1552 = vsub.f32 %v379, %v1120
        %v1553 = vsub.f32 %v380, %v1125
        %v1554 = vsub.f32 %v381, %v1130
        %v1555 = vsub.f32 %v382, %v1135
        %v1556 = vsub.f32 %v383, %v1140
        %v1557 = vsub.f32 %v384, %v1145
        %v1558 = vsub.f32 %v385, %v1150
        %v1559 = vsub.f32 %v386, %v1155
        %v1560 = vmul.f32 %v1537, %v1552
        %v1561 = vmul.f32 %v1539, %v1553
        %v1562 = vmul.f32 %v1541, %v1554
        %v1563 = vmul.f32 %v1543, %v1555
        %v1564 = vmul.f32 %v1545, %v1556
        %v1565 = vmul.f32 %v1547, %v1557
        %v1566 = vmul.f32 %v1549, %v1558
        %v1567 = vmul.f32 %v1551, %v1559
        %v1568 = vadd.f32 %v1120, %v1560
        %v1569 = vadd.f32 %v1125, %v1561
        %v1570 = vadd.f32 %v1130, %v1562
        %v1571 = vadd.f32 %v1135, %v1563
        %v1572 = vadd.f32 %v1140, %v1564
        %v1573 = vadd.f32 %v1145, %v1565
        %v1574 = vadd.f32 %v1150, %v1566
        %v1575 = vadd.f32 %v1155, %v1567
        %vm1576 = vcmask 130048
        %1577 = vst.msk [vmem:[%s370] sm:$0xff] %vm1576, %v1568
        %1578 = vst.msk [vmem:[%s370 + $0x8] sm:$0xff] %vm1576, %v1569
        %1579 = vst.msk [vmem:[%s370 + $0x10] sm:$0xff] %vm1576, %v1570
        %1580 = vst.msk [vmem:[%s370 + $0x18] sm:$0xff] %vm1576, %v1571
        %1581 = vst.msk [vmem:[%s370 + $0x20] sm:$0xff] %vm1576, %v1572
        %1582 = vst.msk [vmem:[%s370 + $0x28] sm:$0xff] %vm1576, %v1573
        %1583 = vst.msk [vmem:[%s370 + $0x30] sm:$0xff] %vm1576, %v1574
        %1584 = vst.msk [vmem:[%s370 + $0x38] sm:$0xff] %vm1576, %v1575
        %s1585 = sand.u32 %s213, 1
        %s1586 = scalar_lea.sflag [#allocation4], %s1585
        %s1587 = sand.u32 %s213, 1
        %s1588 = smul.addr %s1587, 64
        %s1589 = scalar_lea.vmem [#allocation7], %s1588
        // Predicated region
        $region57: #{tpu_custom_call.1} parent=47 // pred_check
          %p1590 = pneg %p223
        $region58: #{tpu_custom_call.1} parent=47 // pred_check_branch
          %1592 = sbr.rel (%p1590) target = $region60
        $region59: #{tpu_custom_call.1} parent=47 // pred_region
          %s1593 = smul.u32 2, %s32
          %s1595 = ssub.s32 1024, 1024
          %1596 = vsyncadd %s1586, %s1595
          %s1597 = smul.addr %s31, 8
          %s1598 = sadd.s32 %s1593, %s1597
          %s1599 = smul.addr %s1598, 128
          %s1600 = scalar_lea.hbm %s7, %s1599
          %s1601 = sshll.u32 %s1589, 4
          %s1602 = int_to_ptr.vmem [resolvable:$true] %s1601
          %1607 = dma.vmem_to_hbm [thread:$0]  %s1602, 1024, %s1600, %s1586, 128, 128, 8
        $region60: #{tpu_custom_call.1} parent=47 // pred_fallthru
          _
      $region48: #{tpu_custom_call.1} parent=5 // pred_fallthru
        _
      %p1608 = scmp.le.s32.totalorder 2, %s22
      // Predicated region
      $region61: #{tpu_custom_call.1} parent=5 // pred_check
        %p1609 = pneg %p1608
      $region62: #{tpu_custom_call.1} parent=5 // pred_check_branch
        %1611 = sbr.rel (%p1609) target = $region64
      $region63: #{tpu_custom_call.1} parent=5 // pred_region
        %s1612 = ssub.s32 %s22, 2
        // Predicated region
        $region65: #{tpu_custom_call.1} parent=63 // pred_check
          %p1613 = pneg %p229
        $region66: #{tpu_custom_call.1} parent=63 // pred_check_branch
          %1615 = sbr.rel (%p1613) target = $region68
        $region67: #{tpu_custom_call.1} parent=63 // pred_region
          %s1616 = sand.u32 %s214, 1
          %s1617 = scalar_lea.sflag [#allocation4], %s1616
          %s1618 = sand.u32 %s214, 1
          %s1619 = smul.addr %s1618, 64
          %s1620 = scalar_lea.vmem [#allocation7], %s1619
          %1621 = dma.done %s1617, 1024
        $region68: #{tpu_custom_call.1} parent=63 // pred_fallthru
          _
      $region64: #{tpu_custom_call.1} parent=5 // pred_fallthru
        _
    $region6: #{tpu_custom_call.1} parent=1 // loop_footer
      %s26 = sadd.s32 1, %s22
    $region7: #{tpu_custom_call.1} parent=1 // loop_footer_branch
      %21 = sbr.rel target = $region3
    $region8: #{tpu_custom_call.1} parent=1 // loop_exit
      _
    %1622 = vsyncpa [#allocation3], 1
    %s1623 = scalar_lea.sflag [#allocation3], 1
    %1624 = vsyncpa %s1623, 1
    %1625 = vsyncpa [#allocation6], 1
    %s1626 = scalar_lea.sflag [#allocation6], 1
    %1627 = vsyncpa %s1626, 1
    %1628 = vsyncpa [#allocation4], 1
    %s1629 = scalar_lea.sflag [#allocation4], 1
    %1630 = vsyncpa %s1629, 1

</llo_original>
